<compile_context>
chip_gen: v6e
topology: v6e:2x2x1
jax: 0.10.0
libtpu: 0.0.40
codegen_flags: <defaults>
</compile_context>

<pallas_src>
import jax
import jax.numpy as jnp
from jax import lax
from jax.experimental import pallas as pl
from jax.experimental.pallas import tpu as pltpu

# ----------------------------- model dims -----------------------------------
B = 2               # batch
C = 4               # input channels
H = W = 16          # spatial
P = 8               # patch size (kernel = stride = P, as in CLIP conv1)
NH, NW = H // P, W // P
NP = NH * NW        # patches per image = 4
PD = C * P * P      # flattened patch dim = 256
D = 128             # patch-embedding width
E = 128             # image-embedding width
NCLS = 10           # real number of classes
NCLS_PAD = 128      # lane-dense padded class dim (zero cols 10..127)
FLAT = C * H * W    # flattened image dim = 1024


# ------------------------------ kernel ---------------------------------------
def classifier_kernel(x_ref,
                      w_pe_ref, b_pe_ref,
                      w_proj_ref, b_proj_ref,
                      w_cls_ref, b_cls_ref,
                      out_ref):
    """Single grid step = whole batch.

    x_ref      : [B, C*H*W]      f32  flattened NCHW images
    w_pe_ref   : [C*H*W, NP*D]   bf16 folded patch-embed conv (im2col folded in)
    b_pe_ref   : [1, NP*D]       f32  conv bias tiled per patch
    w_proj_ref : [D, E]  bf16 ,  b_proj_ref : [1, E]        f32
    w_cls_ref  : [E, NCLS_PAD] bf16,  b_cls_ref : [1, NCLS_PAD] f32
    out_ref    : [B, NCLS_PAD]   f32  padded logits
    """
    x = x_ref[...].astype(jnp.bfloat16)                         # [B, 1024]

    # --- image_encoder: patch-embed conv as ONE folded matmul + QuickGELU ----
    h = jnp.dot(x, w_pe_ref[...],
                preferred_element_type=jnp.float32) + b_pe_ref[...]  # [B, NP*D]
    h = h * jax.nn.sigmoid(1.702 * h)                           # QuickGELU (f32)

    # --- mean pool over patches: static 128-lane slices (no relayout) --------
    pooled = h[:, 0:D]
    for n in range(1, NP):
        pooled = pooled + h[:, n * D:(n + 1) * D]
    pooled = pooled * (1.0 / NP)                                # [B, D] f32

    # --- projection to image embedding ---------------------------------------
    emb = jnp.dot(pooled.astype(jnp.bfloat16), w_proj_ref[...],
                  preferred_element_type=jnp.float32) + b_proj_ref[...]  # [B, E]

    # --- classification_head: L2 normalize (single rsqrt on EUP) + Linear ----
    # torch.nn.functional.normalize: x / max(||x||_2, eps), eps = 1e-12
    sumsq = jnp.sum(emb * emb, axis=-1, keepdims=True)
    emb_n = emb * lax.rsqrt(jnp.maximum(sumsq, 1e-24))

    logits = jnp.dot(emb_n.astype(jnp.bfloat16), w_cls_ref[...],
                     preferred_element_type=jnp.float32) + b_cls_ref[...]
    out_ref[...] = logits.astype(out_ref.dtype)                 # [B, 128]


# ------------------------------ wrapper ---------------------------------------
def image_classifier_forward(x_nchw, kparams):
    """x_nchw: [B, C, H, W] float32 (NCHW, matching PyTorch conv layout)."""
    b = x_nchw.shape[0]
    # Free row-major reshape (bitcast) -- no im2col op, no HBM round trip.
    x_flat = x_nchw.reshape(b, FLAT)

    out = pl.pallas_call(
        classifier_kernel,
        out_shape=jax.ShapeDtypeStruct((b, NCLS_PAD), jnp.float32),
        grid=(1,),
        in_specs=[
            pl.BlockSpec((b, FLAT), lambda i: (0, 0)),
            pl.BlockSpec((FLAT, NP * D), lambda i: (0, 0)),
            pl.BlockSpec((1, NP * D), lambda i: (0, 0)),
            pl.BlockSpec((D, E), lambda i: (0, 0)),
            pl.BlockSpec((1, E), lambda i: (0, 0)),
            pl.BlockSpec((E, NCLS_PAD), lambda i: (0, 0)),
            pl.BlockSpec((1, NCLS_PAD), lambda i: (0, 0)),
        ],
        out_specs=pl.BlockSpec((b, NCLS_PAD), lambda i: (0, 0)),
        compiler_params=pltpu.CompilerParams(
            dimension_semantics=("arbitrary",)),   # 1-step grid: nothing to shard
    )(x_flat,
      kparams["w_pe_fold"], kparams["b_pe_fold"],
      kparams["w_proj"], kparams["b_proj"],
      kparams["w_cls"], kparams["b_cls"])

    # strip the lane padding outside the kernel
    return out[:, :NCLS]


# ---------------------------- param init --------------------------------------
def init_params(key):
    ks = jax.random.split(key, 7)
    # torch Linear/Conv store weight as [out, in]; we keep [in, out] (pre-transposed)
    w_cls = jax.random.normal(ks[4], (E, NCLS), jnp.float32) * 0.02
    b_cls = jax.random.normal(ks[5], (1, NCLS), jnp.float32) * 0.01
    w_cls_pad = jnp.zeros((E, NCLS_PAD), jnp.float32).at[:, :NCLS].set(w_cls)
    b_cls_pad = jnp.zeros((1, NCLS_PAD), jnp.float32).at[:, :NCLS].set(b_cls)
    return {
        # bf16 MXU operands, f32 biases (elementwise path stays f32)
        "w_pe":   (jax.random.normal(ks[0], (PD, D), jnp.float32) * 0.02
                   ).astype(jnp.bfloat16),          # flatten order (c, kh, kw)
        "b_pe":   jax.random.normal(ks[1], (1, D), jnp.float32) * 0.01,
        "w_proj": (jax.random.normal(ks[2], (D, E), jnp.float32) * 0.02
                   ).astype(jnp.bfloat16),
        "b_proj": jax.random.normal(ks[3], (1, E), jnp.float32) * 0.01,
        "w_cls":  w_cls_pad.astype(jnp.bfloat16),
        "b_cls":  b_cls_pad,
    }


def prepare_kernel_params(params):
    """One-time weight folding: stride-P non-overlapping conv over a fixed
    H x W image is exactly a linear map [C*H*W] -> [NP*D]; fold the im2col
    permutation into the weight so the kernel needs zero data rearrangement."""
    w = params["w_pe"].astype(jnp.float32).reshape(C, P, P, D)      # [c,kh,kw,d]
    eye = jnp.eye(NP, dtype=jnp.float32).reshape(NH, NW, NP)        # [ph,pw,n]
    # W_fold[(c,ph,kh,pw,kw), (n,d)] = W_pe[(c,kh,kw), d] * [n == ph*NW+pw]
    w_fold = jnp.einsum("ckld,hwn->chkwlnd", w, eye).reshape(FLAT, NP * D)
    b_fold = jnp.tile(params["b_pe"], (1, NP))                      # [1, NP*D]
    return {
        "w_pe_fold": w_fold.astype(jnp.bfloat16),
        "b_pe_fold": b_fold,
        "w_proj": params["w_proj"], "b_proj": params["b_proj"],
        "w_cls": params["w_cls"], "b_cls": params["b_cls"],
    }


# ---------------------------- reference (pure JAX) -----------------------------
def reference_forward(x_nchw, params):
    """Original im2col formulation of the same conv (proves equivalence)."""
    b, c, h, w = x_nchw.shape
    nh, nw = h // P, w // P
    patches = (x_nchw.reshape(b, c, nh, P, nw, P)
               .transpose(0, 2, 4, 1, 3, 5)
               .reshape(b, nh * nw, c * P * P)
               .astype(jnp.bfloat16))
    hdn = jnp.einsum("bnk,kd->bnd", patches, params["w_pe"],
                     preferred_element_type=jnp.float32) + params["b_pe"]
    hdn = hdn * jax.nn.sigmoid(1.702 * hdn)                    # QuickGELU
    pooled = hdn.mean(axis=1)                                   # [B, D]
    emb = jnp.dot(pooled.astype(jnp.bfloat16), params["w_proj"],
                  preferred_element_type=jnp.float32) + params["b_proj"]
    emb = emb / jnp.maximum(jnp.linalg.norm(emb, axis=-1, keepdims=True), 1e-12)
    logits = jnp.dot(emb.astype(jnp.bfloat16), params["w_cls"],
                     preferred_element_type=jnp.float32) + params["b_cls"]
    return logits[:, :NCLS]


if __name__ == "__main__":
    key = jax.random.PRNGKey(0)
    k_x, k_p = jax.random.split(key)
    x = jax.random.normal(k_x, (B, C, H, W), jnp.float32)   # NCHW input
    params = init_params(k_p)
    kparams = prepare_kernel_params(params)   # one-time, outside the hot path

    out = image_classifier_forward(x, kparams)
    out = jax.block_until_ready(out)

    ref = reference_forward(x, params)
    assert out.shape == (B, NCLS), out.shape
    assert jnp.allclose(out, ref, atol=1e-3, rtol=1e-3), (
        f"mismatch: max abs err {jnp.max(jnp.abs(out - ref))}")

    print("KERNEL_OK")
</pallas_src>

<mosaic_0001>
module attributes {stable_mosaic.version = 11 : i64} {
  func.func @classifier_kernel(%arg0: i32, %arg1: memref<2x1024xf32, #tpu.memory_space<vmem>>, %arg2: memref<1024x512xbf16, #tpu.memory_space<vmem>>, %arg3: memref<1x512xf32, #tpu.memory_space<vmem>>, %arg4: memref<128x128xbf16, #tpu.memory_space<vmem>>, %arg5: memref<1x128xf32, #tpu.memory_space<vmem>>, %arg6: memref<128x128xbf16, #tpu.memory_space<vmem>>, %arg7: memref<1x128xf32, #tpu.memory_space<vmem>>, %arg8: memref<2x128xf32, #tpu.memory_space<vmem>>) attributes {dimension_semantics = [#tpu.dimension_semantics<arbitrary>], iteration_bounds = array<i64: 1>, scalar_prefetch = 0 : i64, scratch_operands = 0 : i64, tpu.core_type = #tpu.core_type<tc>, window_params = [{pipeline_mode = #tpu.pipeline_mode<synchronous>, transform_indices = @transform_0, window_bounds = array<i64: 2, 1024>}, {pipeline_mode = #tpu.pipeline_mode<synchronous>, transform_indices = @transform_1, window_bounds = array<i64: 1024, 512>}, {pipeline_mode = #tpu.pipeline_mode<synchronous>, transform_indices = @transform_2, window_bounds = array<i64: 1, 512>}, {pipeline_mode = #tpu.pipeline_mode<synchronous>, transform_indices = @transform_3, window_bounds = array<i64: 128, 128>}, {pipeline_mode = #tpu.pipeline_mode<synchronous>, transform_indices = @transform_4, window_bounds = array<i64: 1, 128>}, {pipeline_mode = #tpu.pipeline_mode<synchronous>, transform_indices = @transform_5, window_bounds = array<i64: 128, 128>}, {pipeline_mode = #tpu.pipeline_mode<synchronous>, transform_indices = @transform_6, window_bounds = array<i64: 1, 128>}, {pipeline_mode = #tpu.pipeline_mode<synchronous>, transform_indices = @transform_7, window_bounds = array<i64: 2, 128>}]} {
    %c0 = arith.constant 0 : index
    %c0_0 = arith.constant 0 : index
    %0 = vector.load %arg1[%c0, %c0_0] : memref<2x1024xf32, #tpu.memory_space<vmem>>, vector<2x1024xf32>
    %1 = arith.truncf %0 : vector<2x1024xf32> to vector<2x1024xbf16>
    %c0_1 = arith.constant 0 : index
    %c0_2 = arith.constant 0 : index
    %2 = vector.load %arg2[%c0_1, %c0_2] : memref<1024x512xbf16, #tpu.memory_space<vmem>>, vector<1024x512xbf16>
    %cst = arith.constant dense<0.000000e+00> : vector<2x512xf32>
    %3 = tpu.matmul %1, %2, %cst {dimension_numbers = #tpu.dot_dimension_numbers<[1], [0], [0], [1], [0, 0, 1, 1], [], []>} : vector<2x1024xbf16>, vector<1024x512xbf16>, vector<2x512xf32> -> vector<2x512xf32>
    %c0_3 = arith.constant 0 : index
    %c0_4 = arith.constant 0 : index
    %4 = vector.load %arg3[%c0_3, %c0_4] : memref<1x512xf32, #tpu.memory_space<vmem>>, vector<1x512xf32>
    %5 = vector.broadcast %4 : vector<1x512xf32> to vector<2x512xf32>
    %6 = arith.addf %3, %5 : vector<2x512xf32>
    %cst_5 = arith.constant 1.702000e+00 : f32
    %7 = vector.broadcast %cst_5 : f32 to vector<2x512xf32>
    %8 = arith.mulf %7, %6 : vector<2x512xf32>
    %9 = arith.negf %8 : vector<2x512xf32>
    %10 = math.exp %9 : vector<2x512xf32>
    %cst_6 = arith.constant 1.000000e+00 : f32
    %11 = vector.broadcast %cst_6 : f32 to vector<2x512xf32>
    %12 = arith.addf %11, %10 : vector<2x512xf32>
    %13 = arith.divf %11, %12 : vector<2x512xf32>
    %14 = arith.mulf %6, %13 : vector<2x512xf32>
    %15 = vector.extract_strided_slice %14 {offsets = [0, 0], sizes = [2, 128], strides = [1, 1]} : vector<2x512xf32> to vector<2x128xf32>
    %16 = vector.extract_strided_slice %14 {offsets = [0, 128], sizes = [2, 128], strides = [1, 1]} : vector<2x512xf32> to vector<2x128xf32>
    %17 = arith.addf %15, %16 : vector<2x128xf32>
    %18 = vector.extract_strided_slice %14 {offsets = [0, 256], sizes = [2, 128], strides = [1, 1]} : vector<2x512xf32> to vector<2x128xf32>
    %19 = arith.addf %17, %18 : vector<2x128xf32>
    %20 = vector.extract_strided_slice %14 {offsets = [0, 384], sizes = [2, 128], strides = [1, 1]} : vector<2x512xf32> to vector<2x128xf32>
    %21 = arith.addf %19, %20 : vector<2x128xf32>
    %cst_7 = arith.constant 2.500000e-01 : f32
    %22 = vector.broadcast %cst_7 : f32 to vector<2x128xf32>
    %23 = arith.mulf %21, %22 : vector<2x128xf32>
    %24 = arith.truncf %23 : vector<2x128xf32> to vector<2x128xbf16>
    %c0_8 = arith.constant 0 : index
    %c0_9 = arith.constant 0 : index
    %25 = vector.load %arg4[%c0_8, %c0_9] : memref<128x128xbf16, #tpu.memory_space<vmem>>, vector<128x128xbf16>
    %cst_10 = arith.constant dense<0.000000e+00> : vector<2x128xf32>
    %26 = tpu.matmul %24, %25, %cst_10 {dimension_numbers = #tpu.dot_dimension_numbers<[1], [0], [0], [1], [0, 0, 1, 1], [], []>} : vector<2x128xbf16>, vector<128x128xbf16>, vector<2x128xf32> -> vector<2x128xf32>
    %c0_11 = arith.constant 0 : index
    %c0_12 = arith.constant 0 : index
    %27 = vector.load %arg5[%c0_11, %c0_12] : memref<1x128xf32, #tpu.memory_space<vmem>>, vector<1x128xf32>
    %28 = vector.broadcast %27 : vector<1x128xf32> to vector<2x128xf32>
    %29 = arith.addf %26, %28 : vector<2x128xf32>
    %30 = arith.mulf %29, %29 : vector<2x128xf32>
    %cst_13 = arith.constant dense<0.000000e+00> : vector<2xf32>
    %31 = vector.multi_reduction <add>, %30, %cst_13 [1] : vector<2x128xf32> to vector<2xf32>
    %32 = vector.shape_cast %31 : vector<2xf32> to vector<2x1xf32>
    %cst_14 = arith.constant 1.000000e-24 : f32
    %33 = vector.broadcast %cst_14 : f32 to vector<2x1xf32>
    %34 = arith.maximumf %32, %33 : vector<2x1xf32>
    %35 = math.rsqrt %34 : vector<2x1xf32>
    %36 = vector.broadcast %35 : vector<2x1xf32> to vector<2x128xf32>
    %37 = arith.mulf %29, %36 : vector<2x128xf32>
    %38 = arith.truncf %37 : vector<2x128xf32> to vector<2x128xbf16>
    %c0_15 = arith.constant 0 : index
    %c0_16 = arith.constant 0 : index
    %39 = vector.load %arg6[%c0_15, %c0_16] : memref<128x128xbf16, #tpu.memory_space<vmem>>, vector<128x128xbf16>
    %cst_17 = arith.constant dense<0.000000e+00> : vector<2x128xf32>
    %40 = tpu.matmul %38, %39, %cst_17 {dimension_numbers = #tpu.dot_dimension_numbers<[1], [0], [0], [1], [0, 0, 1, 1], [], []>} : vector<2x128xbf16>, vector<128x128xbf16>, vector<2x128xf32> -> vector<2x128xf32>
    %c0_18 = arith.constant 0 : index
    %c0_19 = arith.constant 0 : index
    %41 = vector.load %arg7[%c0_18, %c0_19] : memref<1x128xf32, #tpu.memory_space<vmem>>, vector<1x128xf32>
    %42 = vector.broadcast %41 : vector<1x128xf32> to vector<2x128xf32>
    %43 = arith.addf %40, %42 : vector<2x128xf32>
    %c0_20 = arith.constant 0 : index
    %c0_21 = arith.constant 0 : index
    %44 = vector.load %arg8[%c0_20, %c0_21] : memref<2x128xf32, #tpu.memory_space<vmem>>, vector<2x128xf32>
    tpu.vector_store %arg8[%c0_20, %c0_21], %43 {strides = array<i32>} : memref<2x128xf32, #tpu.memory_space<vmem>>, vector<2x128xf32>,
    return
  }
  func.func @transform_0(%arg0: i32) -> (i32, i32) {
    %c0_i32 = arith.constant 0 : i32
    %c0_i32_0 = arith.constant 0 : i32
    %c0_i32_1 = arith.constant 0 : i32
    return %c0_i32, %c0_i32_0 : i32, i32
  }
  func.func @transform_1(%arg0: i32) -> (i32, i32) {
    %c0_i32 = arith.constant 0 : i32
    %c0_i32_0 = arith.constant 0 : i32
    %c0_i32_1 = arith.constant 0 : i32
    return %c0_i32, %c0_i32_0 : i32, i32
  }
  func.func @transform_2(%arg0: i32) -> (i32, i32) {
    %c0_i32 = arith.constant 0 : i32
    %c0_i32_0 = arith.constant 0 : i32
    %c0_i32_1 = arith.constant 0 : i32
    return %c0_i32, %c0_i32_0 : i32, i32
  }
  func.func @transform_3(%arg0: i32) -> (i32, i32) {
    %c0_i32 = arith.constant 0 : i32
    %c0_i32_0 = arith.constant 0 : i32
    %c0_i32_1 = arith.constant 0 : i32
    return %c0_i32, %c0_i32_0 : i32, i32
  }
  func.func @transform_4(%arg0: i32) -> (i32, i32) {
    %c0_i32 = arith.constant 0 : i32
    %c0_i32_0 = arith.constant 0 : i32
    %c0_i32_1 = arith.constant 0 : i32
    return %c0_i32, %c0_i32_0 : i32, i32
  }
  func.func @transform_5(%arg0: i32) -> (i32, i32) {
    %c0_i32 = arith.constant 0 : i32
    %c0_i32_0 = arith.constant 0 : i32
    %c0_i32_1 = arith.constant 0 : i32
    return %c0_i32, %c0_i32_0 : i32, i32
  }
  func.func @transform_6(%arg0: i32) -> (i32, i32) {
    %c0_i32 = arith.constant 0 : i32
    %c0_i32_0 = arith.constant 0 : i32
    %c0_i32_1 = arith.constant 0 : i32
    return %c0_i32, %c0_i32_0 : i32, i32
  }
  func.func @transform_7(%arg0: i32) -> (i32, i32) {
    %c0_i32 = arith.constant 0 : i32
    %c0_i32_0 = arith.constant 0 : i32
    %c0_i32_1 = arith.constant 0 : i32
    return %c0_i32, %c0_i32_0 : i32, i32
  }
}

</mosaic_0001>

<llo_original>
// kernel: tpu_custom_call.1
$region0: #{tpu_custom_call.1}
  #allocation0 [shape = 'u32[]', space=smem, size = 0x4, offset = 0x4, fixed_abs, tag = 'smem constant byte address 0x4 - core index']
  #allocation1 [shape = 'u32[144,128]{1,0:T(1,128)}', space=vmem, size = 0x12000, scoped, tag = 'internal scratch']
  %s0 = inlined_call_operand.hbm [shape: f32[2,1024], index: 0, kind: input, shape index: {}]
  %s1 = inlined_call_operand.hbm [shape: bf16[1024,512], index: 1, kind: input, shape index: {}]
  %s2 = inlined_call_operand.hbm [shape: f32[1,512], index: 2, kind: input, shape index: {}]
  %s3 = inlined_call_operand.hbm [shape: bf16[128,128], index: 3, kind: input, shape index: {}]
  %s4 = inlined_call_operand.vmem [shape: f32[1,128], index: 4, kind: input, shape index: {}]
  %s5 = inlined_call_operand.hbm [shape: bf16[128,128], index: 5, kind: input, shape index: {}]
  %s6 = inlined_call_operand.vmem [shape: f32[1,128], index: 6, kind: input, shape index: {}]
  %s7 = inlined_call_operand.hbm [shape: f32[2,128], index: 7, kind: output, shape index: {}]
  %s8 = sld [smem:[#allocation0]]
  $region58: #{tpu_custom_call.1} parent=0
    _
  %s10 = ssub.s32 1, %s8
  %s11 = scalar_select 0, %s10, %s8
  $region1: #{tpu_custom_call.1} parent=0
    #allocation2 [shape = 'u8[8192]{0}', space=vmem, size = 0x2000, scoped, tag = 'input window, operand 0, single buffered']
    #allocation3 [shape = 's32[1]{0}', space=sflag, size = 0x4, scoped, tag = 'scoped memory for tpu_custom_call.1']
    #allocation4 [shape = 's32[1]{0}', space=sflag, size = 0x4, scoped, tag = 'scoped memory for tpu_custom_call.1']
    #allocation5 [shape = 'u8[1048576]{0}', space=vmem, size = 0x100000, scoped, tag = 'input window, operand 1, single buffered']
    #allocation6 [shape = 's32[1]{0}', space=sflag, size = 0x4, scoped, tag = 'scoped memory for tpu_custom_call.1']
    #allocation7 [shape = 'u8[2048]{0}', space=vmem, size = 0x800, scoped, tag = 'input window, operand 2, single buffered']
    #allocation8 [shape = 'u8[32768]{0}', space=vmem, size = 0x8000, scoped, tag = 'input window, operand 3, single buffered']
    #allocation9 [shape = 's32[1]{0}', space=sflag, size = 0x4, scoped, tag = 'scoped memory for tpu_custom_call.1']
    #allocation10 [shape = 'u8[32768]{0}', space=vmem, size = 0x8000, scoped, tag = 'input window, operand 5, single buffered']
    #allocation11 [shape = 'u8[1024]{0}', space=vmem, size = 0x400, scoped, tag = 'output window, operand 0, single buffered']
    %12 = vsyncpa [#allocation3], 0
    %13 = vsyncpa [#allocation6], 0
    %14 = vsyncpa [#allocation9], 0
    %15 = vsyncpa [#allocation4], 0
    // Predicated region
    $region2: #{tpu_custom_call.1} parent=1 // pred_check
      _
    $region3: #{tpu_custom_call.1} parent=1 // pred_check_branch
      %17 = sbr.rel (0) target = $region5
    $region4: #{tpu_custom_call.1} parent=1 // pred_region
      %s19 = ssub.s32 256, 256
      %20 = vsyncadd [#allocation3], %s19
      %s22 = sshll.u32 [#allocation2], 4
      %s23 = int_to_ptr.vmem [resolvable:$true] %s22
      %25 = dma.hbm_to_vmem [thread:$0]  %s0, 256, %s23, [#allocation3]
    $region5: #{tpu_custom_call.1} parent=1 // pred_fallthru
      _
    // Predicated region
    $region6: #{tpu_custom_call.1} parent=1 // pred_check
      _
    $region7: #{tpu_custom_call.1} parent=1 // pred_check_branch
      %27 = sbr.rel (0) target = $region9
    $region8: #{tpu_custom_call.1} parent=1 // pred_region
      %s29 = ssub.s32 32768, 32768
      %30 = vsyncadd [#allocation6], %s29
      %s31 = sshll.u32 [#allocation5], 4
      %s32 = int_to_ptr.vmem [resolvable:$true] %s31
      %37 = dma.hbm_to_vmem [thread:$0]  %s1, 32768, %s32, [#allocation6], 256, 256, 16
    $region9: #{tpu_custom_call.1} parent=1 // pred_fallthru
      _
    // Predicated region
    $region10: #{tpu_custom_call.1} parent=1 // pred_check
      _
    $region11: #{tpu_custom_call.1} parent=1 // pred_check_branch
      %39 = sbr.rel (0) target = $region13
    $region12: #{tpu_custom_call.1} parent=1 // pred_region
      %s41 = ssub.s32 64, 64
      %42 = vsyncadd [#allocation6], %s41
      %s44 = sshll.u32 [#allocation7], 4
      %s45 = int_to_ptr.vmem [resolvable:$true] %s44
      %47 = dma.hbm_to_vmem [thread:$0]  %s2, 64, %s45, [#allocation6]
    $region13: #{tpu_custom_call.1} parent=1 // pred_fallthru
      _
    // Predicated region
    $region14: #{tpu_custom_call.1} parent=1 // pred_check
      _
    $region15: #{tpu_custom_call.1} parent=1 // pred_check_branch
      %49 = sbr.rel (0) target = $region17
    $region16: #{tpu_custom_call.1} parent=1 // pred_region
      %s51 = ssub.s32 1024, 1024
      %52 = vsyncadd [#allocation9], %s51
      %s53 = sshll.u32 [#allocation8], 4
      %s54 = int_to_ptr.vmem [resolvable:$true] %s53
      %59 = dma.hbm_to_vmem [thread:$0]  %s3, 1024, %s54, [#allocation9], 64, 64, 4
    $region17: #{tpu_custom_call.1} parent=1 // pred_fallthru
      _
    // Predicated region
    $region18: #{tpu_custom_call.1} parent=1 // pred_check
      _
    $region19: #{tpu_custom_call.1} parent=1 // pred_check_branch
      %61 = sbr.rel (0) target = $region21
    $region20: #{tpu_custom_call.1} parent=1 // pred_region
      _
    $region21: #{tpu_custom_call.1} parent=1 // pred_fallthru
      _
    // Predicated region
    $region22: #{tpu_custom_call.1} parent=1 // pred_check
      _
    $region23: #{tpu_custom_call.1} parent=1 // pred_check_branch
      %63 = sbr.rel (0) target = $region25
    $region24: #{tpu_custom_call.1} parent=1 // pred_region
      %s65 = ssub.s32 1024, 1024
      %66 = vsyncadd [#allocation9], %s65
      %s67 = sshll.u32 [#allocation10], 4
      %s68 = int_to_ptr.vmem [resolvable:$true] %s67
      %73 = dma.hbm_to_vmem [thread:$0]  %s5, 1024, %s68, [#allocation9], 64, 64, 4
    $region25: #{tpu_custom_call.1} parent=1 // pred_fallthru
      _
    // Predicated region
    $region26: #{tpu_custom_call.1} parent=1 // pred_check
      _
    $region27: #{tpu_custom_call.1} parent=1 // pred_check_branch
      %75 = sbr.rel (0) target = $region29
    $region28: #{tpu_custom_call.1} parent=1 // pred_region
      _
    $region29: #{tpu_custom_call.1} parent=1 // pred_fallthru
      _
    // Predicated region
    $region30: #{tpu_custom_call.1} parent=1 // pred_check
      _
    $region31: #{tpu_custom_call.1} parent=1 // pred_check_branch
      %77 = sbr.rel (0) target = $region33
    $region32: #{tpu_custom_call.1} parent=1 // pred_region
      %78 = dma.done [#allocation3], 256
    $region33: #{tpu_custom_call.1} parent=1 // pred_fallthru
      _
    // Predicated region
    $region34: #{tpu_custom_call.1} parent=1 // pred_check
      _
    $region35: #{tpu_custom_call.1} parent=1 // pred_check_branch
      %80 = sbr.rel (0) target = $region37
    $region36: #{tpu_custom_call.1} parent=1 // pred_region
      %81 = dma.done [#allocation6], 32768
    $region37: #{tpu_custom_call.1} parent=1 // pred_fallthru
      _
    // Predicated region
    $region38: #{tpu_custom_call.1} parent=1 // pred_check
      _
    $region39: #{tpu_custom_call.1} parent=1 // pred_check_branch
      %83 = sbr.rel (0) target = $region41
    $region40: #{tpu_custom_call.1} parent=1 // pred_region
      %84 = dma.done [#allocation6], 64
    $region41: #{tpu_custom_call.1} parent=1 // pred_fallthru
      _
    // Predicated region
    $region42: #{tpu_custom_call.1} parent=1 // pred_check
      _
    $region43: #{tpu_custom_call.1} parent=1 // pred_check_branch
      %86 = sbr.rel (0) target = $region45
    $region44: #{tpu_custom_call.1} parent=1 // pred_region
      %87 = dma.done [#allocation9], 1024
    $region45: #{tpu_custom_call.1} parent=1 // pred_fallthru
      _
    // Predicated region
    $region46: #{tpu_custom_call.1} parent=1 // pred_check
      _
    $region47: #{tpu_custom_call.1} parent=1 // pred_check_branch
      %89 = sbr.rel (0) target = $region49
    $region48: #{tpu_custom_call.1} parent=1 // pred_region
      %90 = dma.done [#allocation9], 1024
    $region49: #{tpu_custom_call.1} parent=1 // pred_fallthru
      _
    %v92 = vld [vmem:[#allocation2] sm:$0xff]
    %v93 = vld [vmem:[#allocation2 + $0x8] sm:$0xff]
    %v96 = vcombine.high %v92, %v92
    %v98 = vunpack.c.l.s4 1983009808
    %v99 = vunpack.c.0.s8 %v98
    %v100 = vlaneseq
    %v101 = vshrl.u32 %v100, 7
    %v102 = vsub.s32 %v99, %v101
    %v103 = vrot.slane %v92, %v102
    %v105 = vunpack.c.l.s4 1983009808
    %v106 = vunpack.c.0.s8 %v105
    %v107 = vlaneseq
    %v108 = vshrl.u32 %v107, 7
    %v109 = vsub.s32 %v106, %v108
    %v110 = vrot.slane %v96, %v109
    %v111 = vcombine.high %v103, %v103
    %v112 = vcombine.high %v110, %v110
    %v113 = vcombine.high %v93, %v93
    %v115 = vunpack.c.l.s4 1983009808
    %v116 = vunpack.c.0.s8 %v115
    %v117 = vlaneseq
    %v118 = vshrl.u32 %v117, 7
    %v119 = vsub.s32 %v116, %v118
    %v120 = vrot.slane %v93, %v119
    %v122 = vunpack.c.l.s4 1983009808
    %v123 = vunpack.c.0.s8 %v122
    %v124 = vlaneseq
    %v125 = vshrl.u32 %v124, 7
    %v126 = vsub.s32 %v123, %v125
    %v127 = vrot.slane %v113, %v126
    %v128 = vcombine.high %v120, %v120
    %v129 = vcombine.high %v127, %v127
    %v138 = vpack.c.bf16 %v103, %v103
    %v139 = vpack.c.bf16 %v111, %v111
    %v140 = vpack.c.bf16 %v110, %v110
    %v141 = vpack.c.bf16 %v112, %v112
    %v142 = vpack.c.bf16 %v120, %v120
    %v143 = vpack.c.bf16 %v128, %v128
    %v144 = vpack.c.bf16 %v127, %v127
    %v145 = vpack.c.bf16 %v129, %v129
    %v146 = vld [vmem:[#allocation5] sm:$0xff]
    %v147 = vld [vmem:[#allocation5 + $0x8] sm:$0xff]
    %v148 = vld [vmem:[#allocation5 + $0x10] sm:$0xff]
    %v149 = vld [vmem:[#allocation5 + $0x18] sm:$0xff]
    %v150 = vld [vmem:[#allocation5 + $0x20] sm:$0xff]
    %v151 = vld [vmem:[#allocation5 + $0x28] sm:$0xff]
    %v152 = vld [vmem:[#allocation5 + $0x30] sm:$0xff]
    %v153 = vld [vmem:[#allocation5 + $0x38] sm:$0xff]
    %v154 = vld [vmem:[#allocation5 + $0x40] sm:$0xff]
    %v155 = vld [vmem:[#allocation5 + $0x48] sm:$0xff]
    %v156 = vld [vmem:[#allocation5 + $0x50] sm:$0xff]
    %v157 = vld [vmem:[#allocation5 + $0x58] sm:$0xff]
    %v158 = vld [vmem:[#allocation5 + $0x60] sm:$0xff]
    %v159 = vld [vmem:[#allocation5 + $0x68] sm:$0xff]
    %v160 = vld [vmem:[#allocation5 + $0x70] sm:$0xff]
    %v161 = vld [vmem:[#allocation5 + $0x78] sm:$0xff]
    %v162 = vld [vmem:[#allocation5 + $0x80] sm:$0xff]
    %v163 = vld [vmem:[#allocation5 + $0x88] sm:$0xff]
    %v164 = vld [vmem:[#allocation5 + $0x90] sm:$0xff]
    %v165 = vld [vmem:[#allocation5 + $0x98] sm:$0xff]
    %v166 = vld [vmem:[#allocation5 + $0xa0] sm:$0xff]
    %v167 = vld [vmem:[#allocation5 + $0xa8] sm:$0xff]
    %v168 = vld [vmem:[#allocation5 + $0xb0] sm:$0xff]
    %v169 = vld [vmem:[#allocation5 + $0xb8] sm:$0xff]
    %v170 = vld [vmem:[#allocation5 + $0xc0] sm:$0xff]
    %v171 = vld [vmem:[#allocation5 + $0xc8] sm:$0xff]
    %v172 = vld [vmem:[#allocation5 + $0xd0] sm:$0xff]
    %v173 = vld [vmem:[#allocation5 + $0xd8] sm:$0xff]
    %v174 = vld [vmem:[#allocation5 + $0xe0] sm:$0xff]
    %v175 = vld [vmem:[#allocation5 + $0xe8] sm:$0xff]
    %v176 = vld [vmem:[#allocation5 + $0xf0] sm:$0xff]
    %v177 = vld [vmem:[#allocation5 + $0xf8] sm:$0xff]
    %v178 = vld [vmem:[#allocation5 + $0x100] sm:$0xff]
    %v179 = vld [vmem:[#allocation5 + $0x108] sm:$0xff]
    %v180 = vld [vmem:[#allocation5 + $0x110] sm:$0xff]
    %v181 = vld [vmem:[#allocation5 + $0x118] sm:$0xff]
    %v182 = vld [vmem:[#allocation5 + $0x120] sm:$0xff]
    %v183 = vld [vmem:[#allocation5 + $0x128] sm:$0xff]
    %v184 = vld [vmem:[#allocation5 + $0x130] sm:$0xff]
    %v185 = vld [vmem:[#allocation5 + $0x138] sm:$0xff]
    %v186 = vld [vmem:[#allocation5 + $0x140] sm:$0xff]
    %v187 = vld [vmem:[#allocation5 + $0x148] sm:$0xff]
    %v188 = vld [vmem:[#allocation5 + $0x150] sm:$0xff]
    %v189 = vld [vmem:[#allocation5 + $0x158] sm:$0xff]
    %v190 = vld [vmem:[#allocation5 + $0x160] sm:$0xff]
    %v191 = vld [vmem:[#allocation5 + $0x168] sm:$0xff]
    %v192 = vld [vmem:[#allocation5 + $0x170] sm:$0xff]
    %v193 = vld [vmem:[#allocation5 + $0x178] sm:$0xff]
    %v194 = vld [vmem:[#allocation5 + $0x180] sm:$0xff]
    %v195 = vld [vmem:[#allocation5 + $0x188] sm:$0xff]
    %v196 = vld [vmem:[#allocation5 + $0x190] sm:$0xff]
    %v197 = vld [vmem:[#allocation5 + $0x198] sm:$0xff]
    %v198 = vld [vmem:[#allocation5 + $0x1a0] sm:$0xff]
    %v199 = vld [vmem:[#allocation5 + $0x1a8] sm:$0xff]
    %v200 = vld [vmem:[#allocation5 + $0x1b0] sm:$0xff]
    %v201 = vld [vmem:[#allocation5 + $0x1b8] sm:$0xff]
    %v202 = vld [vmem:[#allocation5 + $0x1c0] sm:$0xff]
    %v203 = vld [vmem:[#allocation5 + $0x1c8] sm:$0xff]
    %v204 = vld [vmem:[#allocation5 + $0x1d0] sm:$0xff]
    %v205 = vld [vmem:[#allocation5 + $0x1d8] sm:$0xff]
    %v206 = vld [vmem:[#allocation5 + $0x1e0] sm:$0xff]
    %v207 = vld [vmem:[#allocation5 + $0x1e8] sm:$0xff]
    %v208 = vld [vmem:[#allocation5 + $0x1f0] sm:$0xff]
    %v209 = vld [vmem:[#allocation5 + $0x1f8] sm:$0xff]
    %v210 = vld [vmem:[#allocation5 + $0x200] sm:$0xff]
    %v211 = vld [vmem:[#allocation5 + $0x208] sm:$0xff]
    %v212 = vld [vmem:[#allocation5 + $0x210] sm:$0xff]
    %v213 = vld [vmem:[#allocation5 + $0x218] sm:$0xff]
    %v214 = vld [vmem:[#allocation5 + $0x220] sm:$0xff]
    %v215 = vld [vmem:[#allocation5 + $0x228] sm:$0xff]
    %v216 = vld [vmem:[#allocation5 + $0x230] sm:$0xff]
    %v217 = vld [vmem:[#allocation5 + $0x238] sm:$0xff]
    %v218 = vld [vmem:[#allocation5 + $0x240] sm:$0xff]
    %v219 = vld [vmem:[#allocation5 + $0x248] sm:$0xff]
    %v220 = vld [vmem:[#allocation5 + $0x250] sm:$0xff]
    %v221 = vld [vmem:[#allocation5 + $0x258] sm:$0xff]
    %v222 = vld [vmem:[#allocation5 + $0x260] sm:$0xff]
    %v223 = vld [vmem:[#allocation5 + $0x268] sm:$0xff]
    %v224 = vld [vmem:[#allocation5 + $0x270] sm:$0xff]
    %v225 = vld [vmem:[#allocation5 + $0x278] sm:$0xff]
    %v226 = vld [vmem:[#allocation5 + $0x280] sm:$0xff]
    %v227 = vld [vmem:[#allocation5 + $0x288] sm:$0xff]
    %v228 = vld [vmem:[#allocation5 + $0x290] sm:$0xff]
    %v229 = vld [vmem:[#allocation5 + $0x298] sm:$0xff]
    %v230 = vld [vmem:[#allocation5 + $0x2a0] sm:$0xff]
    %v231 = vld [vmem:[#allocation5 + $0x2a8] sm:$0xff]
    %v232 = vld [vmem:[#allocation5 + $0x2b0] sm:$0xff]
    %v233 = vld [vmem:[#allocation5 + $0x2b8] sm:$0xff]
    %v234 = vld [vmem:[#allocation5 + $0x2c0] sm:$0xff]
    %v235 = vld [vmem:[#allocation5 + $0x2c8] sm:$0xff]
    %v236 = vld [vmem:[#allocation5 + $0x2d0] sm:$0xff]
    %v237 = vld [vmem:[#allocation5 + $0x2d8] sm:$0xff]
    %v238 = vld [vmem:[#allocation5 + $0x2e0] sm:$0xff]
    %v239 = vld [vmem:[#allocation5 + $0x2e8] sm:$0xff]
    %v240 = vld [vmem:[#allocation5 + $0x2f0] sm:$0xff]
    %v241 = vld [vmem:[#allocation5 + $0x2f8] sm:$0xff]
    %v242 = vld [vmem:[#allocation5 + $0x300] sm:$0xff]
    %v243 = vld [vmem:[#allocation5 + $0x308] sm:$0xff]
    %v244 = vld [vmem:[#allocation5 + $0x310] sm:$0xff]
    %v245 = vld [vmem:[#allocation5 + $0x318] sm:$0xff]
    %v246 = vld [vmem:[#allocation5 + $0x320] sm:$0xff]
    %v247 = vld [vmem:[#allocation5 + $0x328] sm:$0xff]
    %v248 = vld [vmem:[#allocation5 + $0x330] sm:$0xff]
    %v249 = vld [vmem:[#allocation5 + $0x338] sm:$0xff]
    %v250 = vld [vmem:[#allocation5 + $0x340] sm:$0xff]
    %v251 = vld [vmem:[#allocation5 + $0x348] sm:$0xff]
    %v252 = vld [vmem:[#allocation5 + $0x350] sm:$0xff]
    %v253 = vld [vmem:[#allocation5 + $0x358] sm:$0xff]
    %v254 = vld [vmem:[#allocation5 + $0x360] sm:$0xff]
    %v255 = vld [vmem:[#allocation5 + $0x368] sm:$0xff]
    %v256 = vld [vmem:[#allocation5 + $0x370] sm:$0xff]
    %v257 = vld [vmem:[#allocation5 + $0x378] sm:$0xff]
    %v258 = vld [vmem:[#allocation5 + $0x380] sm:$0xff]
    %v259 = vld [vmem:[#allocation5 + $0x388] sm:$0xff]
    %v260 = vld [vmem:[#allocation5 + $0x390] sm:$0xff]
    %v261 = vld [vmem:[#allocation5 + $0x398] sm:$0xff]
    %v262 = vld [vmem:[#allocation5 + $0x3a0] sm:$0xff]
    %v263 = vld [vmem:[#allocation5 + $0x3a8] sm:$0xff]
    %v264 = vld [vmem:[#allocation5 + $0x3b0] sm:$0xff]
    %v265 = vld [vmem:[#allocation5 + $0x3b8] sm:$0xff]
    %v266 = vld [vmem:[#allocation5 + $0x3c0] sm:$0xff]
    %v267 = vld [vmem:[#allocation5 + $0x3c8] sm:$0xff]
    %v268 = vld [vmem:[#allocation5 + $0x3d0] sm:$0xff]
    %v269 = vld [vmem:[#allocation5 + $0x3d8] sm:$0xff]
    %v270 = vld [vmem:[#allocation5 + $0x3e0] sm:$0xff]
    %v271 = vld [vmem:[#allocation5 + $0x3e8] sm:$0xff]
    %v272 = vld [vmem:[#allocation5 + $0x3f0] sm:$0xff]
    %v273 = vld [vmem:[#allocation5 + $0x3f8] sm:$0xff]
    %v274 = vld [vmem:[#allocation5 + $0x400] sm:$0xff]
    %v275 = vld [vmem:[#allocation5 + $0x408] sm:$0xff]
    %v276 = vld [vmem:[#allocation5 + $0x410] sm:$0xff]
    %v277 = vld [vmem:[#allocation5 + $0x418] sm:$0xff]
    %v278 = vld [vmem:[#allocation5 + $0x420] sm:$0xff]
    %v279 = vld [vmem:[#allocation5 + $0x428] sm:$0xff]
    %v280 = vld [vmem:[#allocation5 + $0x430] sm:$0xff]
    %v281 = vld [vmem:[#allocation5 + $0x438] sm:$0xff]
    %v282 = vld [vmem:[#allocation5 + $0x440] sm:$0xff]
    %v283 = vld [vmem:[#allocation5 + $0x448] sm:$0xff]
    %v284 = vld [vmem:[#allocation5 + $0x450] sm:$0xff]
    %v285 = vld [vmem:[#allocation5 + $0x458] sm:$0xff]
    %v286 = vld [vmem:[#allocation5 + $0x460] sm:$0xff]
    %v287 = vld [vmem:[#allocation5 + $0x468] sm:$0xff]
    %v288 = vld [vmem:[#allocation5 + $0x470] sm:$0xff]
    %v289 = vld [vmem:[#allocation5 + $0x478] sm:$0xff]
    %v290 = vld [vmem:[#allocation5 + $0x480] sm:$0xff]
    %v291 = vld [vmem:[#allocation5 + $0x488] sm:$0xff]
    %v292 = vld [vmem:[#allocation5 + $0x490] sm:$0xff]
    %v293 = vld [vmem:[#allocation5 + $0x498] sm:$0xff]
    %v294 = vld [vmem:[#allocation5 + $0x4a0] sm:$0xff]
    %v295 = vld [vmem:[#allocation5 + $0x4a8] sm:$0xff]
    %v296 = vld [vmem:[#allocation5 + $0x4b0] sm:$0xff]
    %v297 = vld [vmem:[#allocation5 + $0x4b8] sm:$0xff]
    %v298 = vld [vmem:[#allocation5 + $0x4c0] sm:$0xff]
    %v299 = vld [vmem:[#allocation5 + $0x4c8] sm:$0xff]
    %v300 = vld [vmem:[#allocation5 + $0x4d0] sm:$0xff]
    %v301 = vld [vmem:[#allocation5 + $0x4d8] sm:$0xff]
    %v302 = vld [vmem:[#allocation5 + $0x4e0] sm:$0xff]
    %v303 = vld [vmem:[#allocation5 + $0x4e8] sm:$0xff]
    %v304 = vld [vmem:[#allocation5 + $0x4f0] sm:$0xff]
    %v305 = vld [vmem:[#allocation5 + $0x4f8] sm:$0xff]
    %v306 = vld [vmem:[#allocation5 + $0x500] sm:$0xff]
    %v307 = vld [vmem:[#allocation5 + $0x508] sm:$0xff]
    %v308 = vld [vmem:[#allocation5 + $0x510] sm:$0xff]
    %v309 = vld [vmem:[#allocation5 + $0x518] sm:$0xff]
    %v310 = vld [vmem:[#allocation5 + $0x520] sm:$0xff]
    %v311 = vld [vmem:[#allocation5 + $0x528] sm:$0xff]
    %v312 = vld [vmem:[#allocation5 + $0x530] sm:$0xff]
    %v313 = vld [vmem:[#allocation5 + $0x538] sm:$0xff]
    %v314 = vld [vmem:[#allocation5 + $0x540] sm:$0xff]
    %v315 = vld [vmem:[#allocation5 + $0x548] sm:$0xff]
    %v316 = vld [vmem:[#allocation5 + $0x550] sm:$0xff]
    %v317 = vld [vmem:[#allocation5 + $0x558] sm:$0xff]
    %v318 = vld [vmem:[#allocation5 + $0x560] sm:$0xff]
    %v319 = vld [vmem:[#allocation5 + $0x568] sm:$0xff]
    %v320 = vld [vmem:[#allocation5 + $0x570] sm:$0xff]
    %v321 = vld [vmem:[#allocation5 + $0x578] sm:$0xff]
    %v322 = vld [vmem:[#allocation5 + $0x580] sm:$0xff]
    %v323 = vld [vmem:[#allocation5 + $0x588] sm:$0xff]
    %v324 = vld [vmem:[#allocation5 + $0x590] sm:$0xff]
    %v325 = vld [vmem:[#allocation5 + $0x598] sm:$0xff]
    %v326 = vld [vmem:[#allocation5 + $0x5a0] sm:$0xff]
    %v327 = vld [vmem:[#allocation5 + $0x5a8] sm:$0xff]
    %v328 = vld [vmem:[#allocation5 + $0x5b0] sm:$0xff]
    %v329 = vld [vmem:[#allocation5 + $0x5b8] sm:$0xff]
    %v330 = vld [vmem:[#allocation5 + $0x5c0] sm:$0xff]
    %v331 = vld [vmem:[#allocation5 + $0x5c8] sm:$0xff]
    %v332 = vld [vmem:[#allocation5 + $0x5d0] sm:$0xff]
    %v333 = vld [vmem:[#allocation5 + $0x5d8] sm:$0xff]
    %v334 = vld [vmem:[#allocation5 + $0x5e0] sm:$0xff]
    %v335 = vld [vmem:[#allocation5 + $0x5e8] sm:$0xff]
    %v336 = vld [vmem:[#allocation5 + $0x5f0] sm:$0xff]
    %v337 = vld [vmem:[#allocation5 + $0x5f8] sm:$0xff]
    %v338 = vld [vmem:[#allocation5 + $0x600] sm:$0xff]
    %v339 = vld [vmem:[#allocation5 + $0x608] sm:$0xff]
    %v340 = vld [vmem:[#allocation5 + $0x610] sm:$0xff]
    %v341 = vld [vmem:[#allocation5 + $0x618] sm:$0xff]
    %v342 = vld [vmem:[#allocation5 + $0x620] sm:$0xff]
    %v343 = vld [vmem:[#allocation5 + $0x628] sm:$0xff]
    %v344 = vld [vmem:[#allocation5 + $0x630] sm:$0xff]
    %v345 = vld [vmem:[#allocation5 + $0x638] sm:$0xff]
    %v346 = vld [vmem:[#allocation5 + $0x640] sm:$0xff]
    %v347 = vld [vmem:[#allocation5 + $0x648] sm:$0xff]
    %v348 = vld [vmem:[#allocation5 + $0x650] sm:$0xff]
    %v349 = vld [vmem:[#allocation5 + $0x658] sm:$0xff]
    %v350 = vld [vmem:[#allocation5 + $0x660] sm:$0xff]
    %v351 = vld [vmem:[#allocation5 + $0x668] sm:$0xff]
    %v352 = vld [vmem:[#allocation5 + $0x670] sm:$0xff]
    %v353 = vld [vmem:[#allocation5 + $0x678] sm:$0xff]
    %v354 = vld [vmem:[#allocation5 + $0x680] sm:$0xff]
    %v355 = vld [vmem:[#allocation5 + $0x688] sm:$0xff]
    %v356 = vld [vmem:[#allocation5 + $0x690] sm:$0xff]
    %v357 = vld [vmem:[#allocation5 + $0x698] sm:$0xff]
    %v358 = vld [vmem:[#allocation5 + $0x6a0] sm:$0xff]
    %v359 = vld [vmem:[#allocation5 + $0x6a8] sm:$0xff]
    %v360 = vld [vmem:[#allocation5 + $0x6b0] sm:$0xff]
    %v361 = vld [vmem:[#allocation5 + $0x6b8] sm:$0xff]
    %v362 = vld [vmem:[#allocation5 + $0x6c0] sm:$0xff]
    %v363 = vld [vmem:[#allocation5 + $0x6c8] sm:$0xff]
    %v364 = vld [vmem:[#allocation5 + $0x6d0] sm:$0xff]
    %v365 = vld [vmem:[#allocation5 + $0x6d8] sm:$0xff]
    %v366 = vld [vmem:[#allocation5 + $0x6e0] sm:$0xff]
    %v367 = vld [vmem:[#allocation5 + $0x6e8] sm:$0xff]
    %v368 = vld [vmem:[#allocation5 + $0x6f0] sm:$0xff]
    %v369 = vld [vmem:[#allocation5 + $0x6f8] sm:$0xff]
    %v370 = vld [vmem:[#allocation5 + $0x700] sm:$0xff]
    %v371 = vld [vmem:[#allocation5 + $0x708] sm:$0xff]
    %v372 = vld [vmem:[#allocation5 + $0x710] sm:$0xff]
    %v373 = vld [vmem:[#allocation5 + $0x718] sm:$0xff]
    %v374 = vld [vmem:[#allocation5 + $0x720] sm:$0xff]
    %v375 = vld [vmem:[#allocation5 + $0x728] sm:$0xff]
    %v376 = vld [vmem:[#allocation5 + $0x730] sm:$0xff]
    %v377 = vld [vmem:[#allocation5 + $0x738] sm:$0xff]
    %v378 = vld [vmem:[#allocation5 + $0x740] sm:$0xff]
    %v379 = vld [vmem:[#allocation5 + $0x748] sm:$0xff]
    %v380 = vld [vmem:[#allocation5 + $0x750] sm:$0xff]
    %v381 = vld [vmem:[#allocation5 + $0x758] sm:$0xff]
    %v382 = vld [vmem:[#allocation5 + $0x760] sm:$0xff]
    %v383 = vld [vmem:[#allocation5 + $0x768] sm:$0xff]
    %v384 = vld [vmem:[#allocation5 + $0x770] sm:$0xff]
    %v385 = vld [vmem:[#allocation5 + $0x778] sm:$0xff]
    %v386 = vld [vmem:[#allocation5 + $0x780] sm:$0xff]
    %v387 = vld [vmem:[#allocation5 + $0x788] sm:$0xff]
    %v388 = vld [vmem:[#allocation5 + $0x790] sm:$0xff]
    %v389 = vld [vmem:[#allocation5 + $0x798] sm:$0xff]
    %v390 = vld [vmem:[#allocation5 + $0x7a0] sm:$0xff]
    %v391 = vld [vmem:[#allocation5 + $0x7a8] sm:$0xff]
    %v392 = vld [vmem:[#allocation5 + $0x7b0] sm:$0xff]
    %v393 = vld [vmem:[#allocation5 + $0x7b8] sm:$0xff]
    %v394 = vld [vmem:[#allocation5 + $0x7c0] sm:$0xff]
    %v395 = vld [vmem:[#allocation5 + $0x7c8] sm:$0xff]
    %v396 = vld [vmem:[#allocation5 + $0x7d0] sm:$0xff]
    %v397 = vld [vmem:[#allocation5 + $0x7d8] sm:$0xff]
    %v398 = vld [vmem:[#allocation5 + $0x7e0] sm:$0xff]
    %v399 = vld [vmem:[#allocation5 + $0x7e8] sm:$0xff]
    %v400 = vld [vmem:[#allocation5 + $0x7f0] sm:$0xff]
    %v401 = vld [vmem:[#allocation5 + $0x7f8] sm:$0xff]
    %v402 = vld [vmem:[#allocation7] sm:$0xf]
    %v404 = vlaneseq
    %v405 = vshrl.u32 %v404, 7
    %v406 = vsub.s32 0, %v405
    %v407 = vrot.slane %v402, %v406
    %v408 = vlaneseq
    %v409 = vshrl.u32 %v408, 7
    %v410 = vsub.s32 1, %v409
    %v411 = vrot.slane %v402, %v410
    %v412 = vlaneseq
    %v413 = vshrl.u32 %v412, 7
    %v414 = vsub.s32 2, %v413
    %v415 = vrot.slane %v402, %v414
    %v416 = vlaneseq
    %v417 = vshrl.u32 %v416, 7
    %v418 = vsub.s32 3, %v417
    %v419 = vrot.slane %v402, %v418
    %v680 = vunpack.c.l.b16 %v146
    %v681 = vunpack.c.h.b16 %v146
    %v682 = vunpack.c.l.b16 %v147
    %v683 = vunpack.c.h.b16 %v147
    %v684 = vunpack.c.l.b16 %v148
    %v685 = vunpack.c.h.b16 %v148
    %v686 = vunpack.c.l.b16 %v149
    %v687 = vunpack.c.h.b16 %v149
    %v688 = vunpack.c.l.b16 %v150
    %v689 = vunpack.c.h.b16 %v150
    %v690 = vunpack.c.l.b16 %v151
    %v691 = vunpack.c.h.b16 %v151
    %v692 = vunpack.c.l.b16 %v152
    %v693 = vunpack.c.h.b16 %v152
    %v694 = vunpack.c.l.b16 %v153
    %v695 = vunpack.c.h.b16 %v153
    %v696 = vunpack.c.l.b16 %v154
    %v697 = vunpack.c.h.b16 %v154
    %v698 = vunpack.c.l.b16 %v155
    %v699 = vunpack.c.h.b16 %v155
    %v700 = vunpack.c.l.b16 %v156
    %v701 = vunpack.c.h.b16 %v156
    %v702 = vunpack.c.l.b16 %v157
    %v703 = vunpack.c.h.b16 %v157
    %v704 = vunpack.c.l.b16 %v158
    %v705 = vunpack.c.h.b16 %v158
    %v706 = vunpack.c.l.b16 %v159
    %v707 = vunpack.c.h.b16 %v159
    %v708 = vunpack.c.l.b16 %v160
    %v709 = vunpack.c.h.b16 %v160
    %v710 = vunpack.c.l.b16 %v161
    %v711 = vunpack.c.h.b16 %v161
    %v712 = vunpack.c.l.b16 %v162
    %v713 = vunpack.c.h.b16 %v162
    %v714 = vunpack.c.l.b16 %v163
    %v715 = vunpack.c.h.b16 %v163
    %v716 = vunpack.c.l.b16 %v164
    %v717 = vunpack.c.h.b16 %v164
    %v718 = vunpack.c.l.b16 %v165
    %v719 = vunpack.c.h.b16 %v165
    %v720 = vunpack.c.l.b16 %v166
    %v721 = vunpack.c.h.b16 %v166
    %v722 = vunpack.c.l.b16 %v167
    %v723 = vunpack.c.h.b16 %v167
    %v724 = vunpack.c.l.b16 %v168
    %v725 = vunpack.c.h.b16 %v168
    %v726 = vunpack.c.l.b16 %v169
    %v727 = vunpack.c.h.b16 %v169
    %v728 = vunpack.c.l.b16 %v170
    %v729 = vunpack.c.h.b16 %v170
    %v730 = vunpack.c.l.b16 %v171
    %v731 = vunpack.c.h.b16 %v171
    %v732 = vunpack.c.l.b16 %v172
    %v733 = vunpack.c.h.b16 %v172
    %v734 = vunpack.c.l.b16 %v173
    %v735 = vunpack.c.h.b16 %v173
    %v736 = vunpack.c.l.b16 %v174
    %v737 = vunpack.c.h.b16 %v174
    %v738 = vunpack.c.l.b16 %v175
    %v739 = vunpack.c.h.b16 %v175
    %v740 = vunpack.c.l.b16 %v176
    %v741 = vunpack.c.h.b16 %v176
    %v742 = vunpack.c.l.b16 %v177
    %v743 = vunpack.c.h.b16 %v177
    %v744 = vunpack.c.l.b16 %v178
    %v745 = vunpack.c.h.b16 %v178
    %v746 = vunpack.c.l.b16 %v179
    %v747 = vunpack.c.h.b16 %v179
    %v748 = vunpack.c.l.b16 %v180
    %v749 = vunpack.c.h.b16 %v180
    %v750 = vunpack.c.l.b16 %v181
    %v751 = vunpack.c.h.b16 %v181
    %v752 = vunpack.c.l.b16 %v182
    %v753 = vunpack.c.h.b16 %v182
    %v754 = vunpack.c.l.b16 %v183
    %v755 = vunpack.c.h.b16 %v183
    %v756 = vunpack.c.l.b16 %v184
    %v757 = vunpack.c.h.b16 %v184
    %v758 = vunpack.c.l.b16 %v185
    %v759 = vunpack.c.h.b16 %v185
    %v760 = vunpack.c.l.b16 %v186
    %v761 = vunpack.c.h.b16 %v186
    %v762 = vunpack.c.l.b16 %v187
    %v763 = vunpack.c.h.b16 %v187
    %v764 = vunpack.c.l.b16 %v188
    %v765 = vunpack.c.h.b16 %v188
    %v766 = vunpack.c.l.b16 %v189
    %v767 = vunpack.c.h.b16 %v189
    %v768 = vunpack.c.l.b16 %v190
    %v769 = vunpack.c.h.b16 %v190
    %v770 = vunpack.c.l.b16 %v191
    %v771 = vunpack.c.h.b16 %v191
    %v772 = vunpack.c.l.b16 %v192
    %v773 = vunpack.c.h.b16 %v192
    %v774 = vunpack.c.l.b16 %v193
    %v775 = vunpack.c.h.b16 %v193
    %v776 = vunpack.c.l.b16 %v194
    %v777 = vunpack.c.h.b16 %v194
    %v778 = vunpack.c.l.b16 %v195
    %v779 = vunpack.c.h.b16 %v195
    %v780 = vunpack.c.l.b16 %v196
    %v781 = vunpack.c.h.b16 %v196
    %v782 = vunpack.c.l.b16 %v197
    %v783 = vunpack.c.h.b16 %v197
    %v784 = vunpack.c.l.b16 %v198
    %v785 = vunpack.c.h.b16 %v198
    %v786 = vunpack.c.l.b16 %v199
    %v787 = vunpack.c.h.b16 %v199
    %v788 = vunpack.c.l.b16 %v200
    %v789 = vunpack.c.h.b16 %v200
    %v790 = vunpack.c.l.b16 %v201
    %v791 = vunpack.c.h.b16 %v201
    %v792 = vunpack.c.l.b16 %v202
    %v793 = vunpack.c.h.b16 %v202
    %v794 = vunpack.c.l.b16 %v203
    %v795 = vunpack.c.h.b16 %v203
    %v796 = vunpack.c.l.b16 %v204
    %v797 = vunpack.c.h.b16 %v204
    %v798 = vunpack.c.l.b16 %v205
    %v799 = vunpack.c.h.b16 %v205
    %v800 = vunpack.c.l.b16 %v206
    %v801 = vunpack.c.h.b16 %v206
    %v802 = vunpack.c.l.b16 %v207
    %v803 = vunpack.c.h.b16 %v207
    %v804 = vunpack.c.l.b16 %v208
    %v805 = vunpack.c.h.b16 %v208
    %v806 = vunpack.c.l.b16 %v209
    %v807 = vunpack.c.h.b16 %v209
    %v808 = vunpack.c.l.b16 %v210
    %v809 = vunpack.c.h.b16 %v210
    %v810 = vunpack.c.l.b16 %v211
    %v811 = vunpack.c.h.b16 %v211
    %v812 = vunpack.c.l.b16 %v212
    %v813 = vunpack.c.h.b16 %v212
    %v814 = vunpack.c.l.b16 %v213
    %v815 = vunpack.c.h.b16 %v213
    %v816 = vunpack.c.l.b16 %v214
    %v817 = vunpack.c.h.b16 %v214
    %v818 = vunpack.c.l.b16 %v215
    %v819 = vunpack.c.h.b16 %v215
    %v820 = vunpack.c.l.b16 %v216
    %v821 = vunpack.c.h.b16 %v216
    %v822 = vunpack.c.l.b16 %v217
    %v823 = vunpack.c.h.b16 %v217
    %v824 = vunpack.c.l.b16 %v218
    %v825 = vunpack.c.h.b16 %v218
    %v826 = vunpack.c.l.b16 %v219
    %v827 = vunpack.c.h.b16 %v219
    %v828 = vunpack.c.l.b16 %v220
    %v829 = vunpack.c.h.b16 %v220
    %v830 = vunpack.c.l.b16 %v221
    %v831 = vunpack.c.h.b16 %v221
    %v832 = vunpack.c.l.b16 %v222
    %v833 = vunpack.c.h.b16 %v222
    %v834 = vunpack.c.l.b16 %v223
    %v835 = vunpack.c.h.b16 %v223
    %v836 = vunpack.c.l.b16 %v224
    %v837 = vunpack.c.h.b16 %v224
    %v838 = vunpack.c.l.b16 %v225
    %v839 = vunpack.c.h.b16 %v225
    %v840 = vunpack.c.l.b16 %v226
    %v841 = vunpack.c.h.b16 %v226
    %v842 = vunpack.c.l.b16 %v227
    %v843 = vunpack.c.h.b16 %v227
    %v844 = vunpack.c.l.b16 %v228
    %v845 = vunpack.c.h.b16 %v228
    %v846 = vunpack.c.l.b16 %v229
    %v847 = vunpack.c.h.b16 %v229
    %v848 = vunpack.c.l.b16 %v230
    %v849 = vunpack.c.h.b16 %v230
    %v850 = vunpack.c.l.b16 %v231
    %v851 = vunpack.c.h.b16 %v231
    %v852 = vunpack.c.l.b16 %v232
    %v853 = vunpack.c.h.b16 %v232
    %v854 = vunpack.c.l.b16 %v233
    %v855 = vunpack.c.h.b16 %v233
    %v856 = vunpack.c.l.b16 %v234
    %v857 = vunpack.c.h.b16 %v234
    %v858 = vunpack.c.l.b16 %v235
    %v859 = vunpack.c.h.b16 %v235
    %v860 = vunpack.c.l.b16 %v236
    %v861 = vunpack.c.h.b16 %v236
    %v862 = vunpack.c.l.b16 %v237
    %v863 = vunpack.c.h.b16 %v237
    %v864 = vunpack.c.l.b16 %v238
    %v865 = vunpack.c.h.b16 %v238
    %v866 = vunpack.c.l.b16 %v239
    %v867 = vunpack.c.h.b16 %v239
    %v868 = vunpack.c.l.b16 %v240
    %v869 = vunpack.c.h.b16 %v240
    %v870 = vunpack.c.l.b16 %v241
    %v871 = vunpack.c.h.b16 %v241
    %v872 = vunpack.c.l.b16 %v242
    %v873 = vunpack.c.h.b16 %v242
    %v874 = vunpack.c.l.b16 %v243
    %v875 = vunpack.c.h.b16 %v243
    %v876 = vunpack.c.l.b16 %v244
    %v877 = vunpack.c.h.b16 %v244
    %v878 = vunpack.c.l.b16 %v245
    %v879 = vunpack.c.h.b16 %v245
    %v880 = vunpack.c.l.b16 %v246
    %v881 = vunpack.c.h.b16 %v246
    %v882 = vunpack.c.l.b16 %v247
    %v883 = vunpack.c.h.b16 %v247
    %v884 = vunpack.c.l.b16 %v248
    %v885 = vunpack.c.h.b16 %v248
    %v886 = vunpack.c.l.b16 %v249
    %v887 = vunpack.c.h.b16 %v249
    %v888 = vunpack.c.l.b16 %v250
    %v889 = vunpack.c.h.b16 %v250
    %v890 = vunpack.c.l.b16 %v251
    %v891 = vunpack.c.h.b16 %v251
    %v892 = vunpack.c.l.b16 %v252
    %v893 = vunpack.c.h.b16 %v252
    %v894 = vunpack.c.l.b16 %v253
    %v895 = vunpack.c.h.b16 %v253
    %v896 = vunpack.c.l.b16 %v254
    %v897 = vunpack.c.h.b16 %v254
    %v898 = vunpack.c.l.b16 %v255
    %v899 = vunpack.c.h.b16 %v255
    %v900 = vunpack.c.l.b16 %v256
    %v901 = vunpack.c.h.b16 %v256
    %v902 = vunpack.c.l.b16 %v257
    %v903 = vunpack.c.h.b16 %v257
    %v904 = vunpack.c.l.b16 %v258
    %v905 = vunpack.c.h.b16 %v258
    %v906 = vunpack.c.l.b16 %v259
    %v907 = vunpack.c.h.b16 %v259
    %v908 = vunpack.c.l.b16 %v260
    %v909 = vunpack.c.h.b16 %v260
    %v910 = vunpack.c.l.b16 %v261
    %v911 = vunpack.c.h.b16 %v261
    %v912 = vunpack.c.l.b16 %v262
    %v913 = vunpack.c.h.b16 %v262
    %v914 = vunpack.c.l.b16 %v263
    %v915 = vunpack.c.h.b16 %v263
    %v916 = vunpack.c.l.b16 %v264
    %v917 = vunpack.c.h.b16 %v264
    %v918 = vunpack.c.l.b16 %v265
    %v919 = vunpack.c.h.b16 %v265
    %v920 = vunpack.c.l.b16 %v266
    %v921 = vunpack.c.h.b16 %v266
    %v922 = vunpack.c.l.b16 %v267
    %v923 = vunpack.c.h.b16 %v267
    %v924 = vunpack.c.l.b16 %v268
    %v925 = vunpack.c.h.b16 %v268
    %v926 = vunpack.c.l.b16 %v269
    %v927 = vunpack.c.h.b16 %v269
    %v928 = vunpack.c.l.b16 %v270
    %v929 = vunpack.c.h.b16 %v270
    %v930 = vunpack.c.l.b16 %v271
    %v931 = vunpack.c.h.b16 %v271
    %v932 = vunpack.c.l.b16 %v272
    %v933 = vunpack.c.h.b16 %v272
    %v934 = vunpack.c.l.b16 %v273
    %v935 = vunpack.c.h.b16 %v273
    %v936 = vunpack.c.l.b16 %v274
    %v937 = vunpack.c.h.b16 %v274
    %v938 = vunpack.c.l.b16 %v275
    %v939 = vunpack.c.h.b16 %v275
    %v940 = vunpack.c.l.b16 %v276
    %v941 = vunpack.c.h.b16 %v276
    %v942 = vunpack.c.l.b16 %v277
    %v943 = vunpack.c.h.b16 %v277
    %v944 = vunpack.c.l.b16 %v278
    %v945 = vunpack.c.h.b16 %v278
    %v946 = vunpack.c.l.b16 %v279
    %v947 = vunpack.c.h.b16 %v279
    %v948 = vunpack.c.l.b16 %v280
    %v949 = vunpack.c.h.b16 %v280
    %v950 = vunpack.c.l.b16 %v281
    %v951 = vunpack.c.h.b16 %v281
    %v952 = vunpack.c.l.b16 %v282
    %v953 = vunpack.c.h.b16 %v282
    %v954 = vunpack.c.l.b16 %v283
    %v955 = vunpack.c.h.b16 %v283
    %v956 = vunpack.c.l.b16 %v284
    %v957 = vunpack.c.h.b16 %v284
    %v958 = vunpack.c.l.b16 %v285
    %v959 = vunpack.c.h.b16 %v285
    %v960 = vunpack.c.l.b16 %v286
    %v961 = vunpack.c.h.b16 %v286
    %v962 = vunpack.c.l.b16 %v287
    %v963 = vunpack.c.h.b16 %v287
    %v964 = vunpack.c.l.b16 %v288
    %v965 = vunpack.c.h.b16 %v288
    %v966 = vunpack.c.l.b16 %v289
    %v967 = vunpack.c.h.b16 %v289
    %v968 = vunpack.c.l.b16 %v290
    %v969 = vunpack.c.h.b16 %v290
    %v970 = vunpack.c.l.b16 %v291
    %v971 = vunpack.c.h.b16 %v291
    %v972 = vunpack.c.l.b16 %v292
    %v973 = vunpack.c.h.b16 %v292
    %v974 = vunpack.c.l.b16 %v293
    %v975 = vunpack.c.h.b16 %v293
    %v976 = vunpack.c.l.b16 %v294
    %v977 = vunpack.c.h.b16 %v294
    %v978 = vunpack.c.l.b16 %v295
    %v979 = vunpack.c.h.b16 %v295
    %v980 = vunpack.c.l.b16 %v296
    %v981 = vunpack.c.h.b16 %v296
    %v982 = vunpack.c.l.b16 %v297
    %v983 = vunpack.c.h.b16 %v297
    %v984 = vunpack.c.l.b16 %v298
    %v985 = vunpack.c.h.b16 %v298
    %v986 = vunpack.c.l.b16 %v299
    %v987 = vunpack.c.h.b16 %v299
    %v988 = vunpack.c.l.b16 %v300
    %v989 = vunpack.c.h.b16 %v300
    %v990 = vunpack.c.l.b16 %v301
    %v991 = vunpack.c.h.b16 %v301
    %v992 = vunpack.c.l.b16 %v302
    %v993 = vunpack.c.h.b16 %v302
    %v994 = vunpack.c.l.b16 %v303
    %v995 = vunpack.c.h.b16 %v303
    %v996 = vunpack.c.l.b16 %v304
    %v997 = vunpack.c.h.b16 %v304
    %v998 = vunpack.c.l.b16 %v305
    %v999 = vunpack.c.h.b16 %v305
    %v1000 = vunpack.c.l.b16 %v306
    %v1001 = vunpack.c.h.b16 %v306
    %v1002 = vunpack.c.l.b16 %v307
    %v1003 = vunpack.c.h.b16 %v307
    %v1004 = vunpack.c.l.b16 %v308
    %v1005 = vunpack.c.h.b16 %v308
    %v1006 = vunpack.c.l.b16 %v309
    %v1007 = vunpack.c.h.b16 %v309
    %v1008 = vunpack.c.l.b16 %v310
    %v1009 = vunpack.c.h.b16 %v310
    %v1010 = vunpack.c.l.b16 %v311
    %v1011 = vunpack.c.h.b16 %v311
    %v1012 = vunpack.c.l.b16 %v312
    %v1013 = vunpack.c.h.b16 %v312
    %v1014 = vunpack.c.l.b16 %v313
    %v1015 = vunpack.c.h.b16 %v313
    %v1016 = vunpack.c.l.b16 %v314
    %v1017 = vunpack.c.h.b16 %v314
    %v1018 = vunpack.c.l.b16 %v315
    %v1019 = vunpack.c.h.b16 %v315
    %v1020 = vunpack.c.l.b16 %v316
    %v1021 = vunpack.c.h.b16 %v316
    %v1022 = vunpack.c.l.b16 %v317
    %v1023 = vunpack.c.h.b16 %v317
    %v1024 = vunpack.c.l.b16 %v318
    %v1025 = vunpack.c.h.b16 %v318
    %v1026 = vunpack.c.l.b16 %v319
    %v1027 = vunpack.c.h.b16 %v319
    %v1028 = vunpack.c.l.b16 %v320
    %v1029 = vunpack.c.h.b16 %v320
    %v1030 = vunpack.c.l.b16 %v321
    %v1031 = vunpack.c.h.b16 %v321
    %v1032 = vunpack.c.l.b16 %v322
    %v1033 = vunpack.c.h.b16 %v322
    %v1034 = vunpack.c.l.b16 %v323
    %v1035 = vunpack.c.h.b16 %v323
    %v1036 = vunpack.c.l.b16 %v324
    %v1037 = vunpack.c.h.b16 %v324
    %v1038 = vunpack.c.l.b16 %v325
    %v1039 = vunpack.c.h.b16 %v325
    %v1040 = vunpack.c.l.b16 %v326
    %v1041 = vunpack.c.h.b16 %v326
    %v1042 = vunpack.c.l.b16 %v327
    %v1043 = vunpack.c.h.b16 %v327
    %v1044 = vunpack.c.l.b16 %v328
    %v1045 = vunpack.c.h.b16 %v328
    %v1046 = vunpack.c.l.b16 %v329
    %v1047 = vunpack.c.h.b16 %v329
    %v1048 = vunpack.c.l.b16 %v330
    %v1049 = vunpack.c.h.b16 %v330
    %v1050 = vunpack.c.l.b16 %v331
    %v1051 = vunpack.c.h.b16 %v331
    %v1052 = vunpack.c.l.b16 %v332
    %v1053 = vunpack.c.h.b16 %v332
    %v1054 = vunpack.c.l.b16 %v333
    %v1055 = vunpack.c.h.b16 %v333
    %v1056 = vunpack.c.l.b16 %v334
    %v1057 = vunpack.c.h.b16 %v334
    %v1058 = vunpack.c.l.b16 %v335
    %v1059 = vunpack.c.h.b16 %v335
    %v1060 = vunpack.c.l.b16 %v336
    %v1061 = vunpack.c.h.b16 %v336
    %v1062 = vunpack.c.l.b16 %v337
    %v1063 = vunpack.c.h.b16 %v337
    %v1064 = vunpack.c.l.b16 %v338
    %v1065 = vunpack.c.h.b16 %v338
    %v1066 = vunpack.c.l.b16 %v339
    %v1067 = vunpack.c.h.b16 %v339
    %v1068 = vunpack.c.l.b16 %v340
    %v1069 = vunpack.c.h.b16 %v340
    %v1070 = vunpack.c.l.b16 %v341
    %v1071 = vunpack.c.h.b16 %v341
    %v1072 = vunpack.c.l.b16 %v342
    %v1073 = vunpack.c.h.b16 %v342
    %v1074 = vunpack.c.l.b16 %v343
    %v1075 = vunpack.c.h.b16 %v343
    %v1076 = vunpack.c.l.b16 %v344
    %v1077 = vunpack.c.h.b16 %v344
    %v1078 = vunpack.c.l.b16 %v345
    %v1079 = vunpack.c.h.b16 %v345
    %v1080 = vunpack.c.l.b16 %v346
    %v1081 = vunpack.c.h.b16 %v346
    %v1082 = vunpack.c.l.b16 %v347
    %v1083 = vunpack.c.h.b16 %v347
    %v1084 = vunpack.c.l.b16 %v348
    %v1085 = vunpack.c.h.b16 %v348
    %v1086 = vunpack.c.l.b16 %v349
    %v1087 = vunpack.c.h.b16 %v349
    %v1088 = vunpack.c.l.b16 %v350
    %v1089 = vunpack.c.h.b16 %v350
    %v1090 = vunpack.c.l.b16 %v351
    %v1091 = vunpack.c.h.b16 %v351
    %v1092 = vunpack.c.l.b16 %v352
    %v1093 = vunpack.c.h.b16 %v352
    %v1094 = vunpack.c.l.b16 %v353
    %v1095 = vunpack.c.h.b16 %v353
    %v1096 = vunpack.c.l.b16 %v354
    %v1097 = vunpack.c.h.b16 %v354
    %v1098 = vunpack.c.l.b16 %v355
    %v1099 = vunpack.c.h.b16 %v355
    %v1100 = vunpack.c.l.b16 %v356
    %v1101 = vunpack.c.h.b16 %v356
    %v1102 = vunpack.c.l.b16 %v357
    %v1103 = vunpack.c.h.b16 %v357
    %v1104 = vunpack.c.l.b16 %v358
    %v1105 = vunpack.c.h.b16 %v358
    %v1106 = vunpack.c.l.b16 %v359
    %v1107 = vunpack.c.h.b16 %v359
    %v1108 = vunpack.c.l.b16 %v360
    %v1109 = vunpack.c.h.b16 %v360
    %v1110 = vunpack.c.l.b16 %v361
    %v1111 = vunpack.c.h.b16 %v361
    %v1112 = vunpack.c.l.b16 %v362
    %v1113 = vunpack.c.h.b16 %v362
    %v1114 = vunpack.c.l.b16 %v363
    %v1115 = vunpack.c.h.b16 %v363
    %v1116 = vunpack.c.l.b16 %v364
    %v1117 = vunpack.c.h.b16 %v364
    %v1118 = vunpack.c.l.b16 %v365
    %v1119 = vunpack.c.h.b16 %v365
    %v1120 = vunpack.c.l.b16 %v366
    %v1121 = vunpack.c.h.b16 %v366
    %v1122 = vunpack.c.l.b16 %v367
    %v1123 = vunpack.c.h.b16 %v367
    %v1124 = vunpack.c.l.b16 %v368
    %v1125 = vunpack.c.h.b16 %v368
    %v1126 = vunpack.c.l.b16 %v369
    %v1127 = vunpack.c.h.b16 %v369
    %v1128 = vunpack.c.l.b16 %v370
    %v1129 = vunpack.c.h.b16 %v370
    %v1130 = vunpack.c.l.b16 %v371
    %v1131 = vunpack.c.h.b16 %v371
    %v1132 = vunpack.c.l.b16 %v372
    %v1133 = vunpack.c.h.b16 %v372
    %v1134 = vunpack.c.l.b16 %v373
    %v1135 = vunpack.c.h.b16 %v373
    %v1136 = vunpack.c.l.b16 %v374
    %v1137 = vunpack.c.h.b16 %v374
    %v1138 = vunpack.c.l.b16 %v375
    %v1139 = vunpack.c.h.b16 %v375
    %v1140 = vunpack.c.l.b16 %v376
    %v1141 = vunpack.c.h.b16 %v376
    %v1142 = vunpack.c.l.b16 %v377
    %v1143 = vunpack.c.h.b16 %v377
    %v1144 = vunpack.c.l.b16 %v378
    %v1145 = vunpack.c.h.b16 %v378
    %v1146 = vunpack.c.l.b16 %v379
    %v1147 = vunpack.c.h.b16 %v379
    %v1148 = vunpack.c.l.b16 %v380
    %v1149 = vunpack.c.h.b16 %v380
    %v1150 = vunpack.c.l.b16 %v381
    %v1151 = vunpack.c.h.b16 %v381
    %v1152 = vunpack.c.l.b16 %v382
    %v1153 = vunpack.c.h.b16 %v382
    %v1154 = vunpack.c.l.b16 %v383
    %v1155 = vunpack.c.h.b16 %v383
    %v1156 = vunpack.c.l.b16 %v384
    %v1157 = vunpack.c.h.b16 %v384
    %v1158 = vunpack.c.l.b16 %v385
    %v1159 = vunpack.c.h.b16 %v385
    %v1160 = vunpack.c.l.b16 %v386
    %v1161 = vunpack.c.h.b16 %v386
    %v1162 = vunpack.c.l.b16 %v387
    %v1163 = vunpack.c.h.b16 %v387
    %v1164 = vunpack.c.l.b16 %v388
    %v1165 = vunpack.c.h.b16 %v388
    %v1166 = vunpack.c.l.b16 %v389
    %v1167 = vunpack.c.h.b16 %v389
    %v1168 = vunpack.c.l.b16 %v390
    %v1169 = vunpack.c.h.b16 %v390
    %v1170 = vunpack.c.l.b16 %v391
    %v1171 = vunpack.c.h.b16 %v391
    %v1172 = vunpack.c.l.b16 %v392
    %v1173 = vunpack.c.h.b16 %v392
    %v1174 = vunpack.c.l.b16 %v393
    %v1175 = vunpack.c.h.b16 %v393
    %v1176 = vunpack.c.l.b16 %v394
    %v1177 = vunpack.c.h.b16 %v394
    %v1178 = vunpack.c.l.b16 %v395
    %v1179 = vunpack.c.h.b16 %v395
    %v1180 = vunpack.c.l.b16 %v396
    %v1181 = vunpack.c.h.b16 %v396
    %v1182 = vunpack.c.l.b16 %v397
    %v1183 = vunpack.c.h.b16 %v397
    %v1184 = vunpack.c.l.b16 %v398
    %v1185 = vunpack.c.h.b16 %v398
    %v1186 = vunpack.c.l.b16 %v399
    %v1187 = vunpack.c.h.b16 %v399
    %v1188 = vunpack.c.l.b16 %v400
    %v1189 = vunpack.c.h.b16 %v400
    %v1190 = vunpack.c.l.b16 %v401
    %v1191 = vunpack.c.h.b16 %v401
    %v1192 = vpack.c.b16 %v684, %v680
    %v1193 = vpack.c.b16 %v685, %v681
    %v1194 = vpack.c.b16 %v686, %v682
    %v1195 = vpack.c.b16 %v687, %v683
    %v1196 = vpack.c.b16 %v692, %v688
    %v1197 = vpack.c.b16 %v693, %v689
    %v1198 = vpack.c.b16 %v694, %v690
    %v1199 = vpack.c.b16 %v695, %v691
    %v1200 = vpack.c.b16 %v700, %v696
    %v1201 = vpack.c.b16 %v701, %v697
    %v1202 = vpack.c.b16 %v702, %v698
    %v1203 = vpack.c.b16 %v703, %v699
    %v1204 = vpack.c.b16 %v708, %v704
    %v1205 = vpack.c.b16 %v709, %v705
    %v1206 = vpack.c.b16 %v710, %v706
    %v1207 = vpack.c.b16 %v711, %v707
    %v1208 = vpack.c.b16 %v716, %v712
    %v1209 = vpack.c.b16 %v717, %v713
    %v1210 = vpack.c.b16 %v718, %v714
    %v1211 = vpack.c.b16 %v719, %v715
    %v1212 = vpack.c.b16 %v724, %v720
    %v1213 = vpack.c.b16 %v725, %v721
    %v1214 = vpack.c.b16 %v726, %v722
    %v1215 = vpack.c.b16 %v727, %v723
    %v1216 = vpack.c.b16 %v732, %v728
    %v1217 = vpack.c.b16 %v733, %v729
    %v1218 = vpack.c.b16 %v734, %v730
    %v1219 = vpack.c.b16 %v735, %v731
    %v1220 = vpack.c.b16 %v740, %v736
    %v1221 = vpack.c.b16 %v741, %v737
    %v1222 = vpack.c.b16 %v742, %v738
    %v1223 = vpack.c.b16 %v743, %v739
    %v1224 = vpack.c.b16 %v748, %v744
    %v1225 = vpack.c.b16 %v749, %v745
    %v1226 = vpack.c.b16 %v750, %v746
    %v1227 = vpack.c.b16 %v751, %v747
    %v1228 = vpack.c.b16 %v756, %v752
    %v1229 = vpack.c.b16 %v757, %v753
    %v1230 = vpack.c.b16 %v758, %v754
    %v1231 = vpack.c.b16 %v759, %v755
    %v1232 = vpack.c.b16 %v764, %v760
    %v1233 = vpack.c.b16 %v765, %v761
    %v1234 = vpack.c.b16 %v766, %v762
    %v1235 = vpack.c.b16 %v767, %v763
    %v1236 = vpack.c.b16 %v772, %v768
    %v1237 = vpack.c.b16 %v773, %v769
    %v1238 = vpack.c.b16 %v774, %v770
    %v1239 = vpack.c.b16 %v775, %v771
    %v1240 = vpack.c.b16 %v780, %v776
    %v1241 = vpack.c.b16 %v781, %v777
    %v1242 = vpack.c.b16 %v782, %v778
    %v1243 = vpack.c.b16 %v783, %v779
    %v1244 = vpack.c.b16 %v788, %v784
    %v1245 = vpack.c.b16 %v789, %v785
    %v1246 = vpack.c.b16 %v790, %v786
    %v1247 = vpack.c.b16 %v791, %v787
    %v1248 = vpack.c.b16 %v796, %v792
    %v1249 = vpack.c.b16 %v797, %v793
    %v1250 = vpack.c.b16 %v798, %v794
    %v1251 = vpack.c.b16 %v799, %v795
    %v1252 = vpack.c.b16 %v804, %v800
    %v1253 = vpack.c.b16 %v805, %v801
    %v1254 = vpack.c.b16 %v806, %v802
    %v1255 = vpack.c.b16 %v807, %v803
    %v1256 = vpack.c.b16 %v812, %v808
    %v1257 = vpack.c.b16 %v813, %v809
    %v1258 = vpack.c.b16 %v814, %v810
    %v1259 = vpack.c.b16 %v815, %v811
    %v1260 = vpack.c.b16 %v820, %v816
    %v1261 = vpack.c.b16 %v821, %v817
    %v1262 = vpack.c.b16 %v822, %v818
    %v1263 = vpack.c.b16 %v823, %v819
    %v1264 = vpack.c.b16 %v828, %v824
    %v1265 = vpack.c.b16 %v829, %v825
    %v1266 = vpack.c.b16 %v830, %v826
    %v1267 = vpack.c.b16 %v831, %v827
    %v1268 = vpack.c.b16 %v836, %v832
    %v1269 = vpack.c.b16 %v837, %v833
    %v1270 = vpack.c.b16 %v838, %v834
    %v1271 = vpack.c.b16 %v839, %v835
    %v1272 = vpack.c.b16 %v844, %v840
    %v1273 = vpack.c.b16 %v845, %v841
    %v1274 = vpack.c.b16 %v846, %v842
    %v1275 = vpack.c.b16 %v847, %v843
    %v1276 = vpack.c.b16 %v852, %v848
    %v1277 = vpack.c.b16 %v853, %v849
    %v1278 = vpack.c.b16 %v854, %v850
    %v1279 = vpack.c.b16 %v855, %v851
    %v1280 = vpack.c.b16 %v860, %v856
    %v1281 = vpack.c.b16 %v861, %v857
    %v1282 = vpack.c.b16 %v862, %v858
    %v1283 = vpack.c.b16 %v863, %v859
    %v1284 = vpack.c.b16 %v868, %v864
    %v1285 = vpack.c.b16 %v869, %v865
    %v1286 = vpack.c.b16 %v870, %v866
    %v1287 = vpack.c.b16 %v871, %v867
    %v1288 = vpack.c.b16 %v876, %v872
    %v1289 = vpack.c.b16 %v877, %v873
    %v1290 = vpack.c.b16 %v878, %v874
    %v1291 = vpack.c.b16 %v879, %v875
    %v1292 = vpack.c.b16 %v884, %v880
    %v1293 = vpack.c.b16 %v885, %v881
    %v1294 = vpack.c.b16 %v886, %v882
    %v1295 = vpack.c.b16 %v887, %v883
    %v1296 = vpack.c.b16 %v892, %v888
    %v1297 = vpack.c.b16 %v893, %v889
    %v1298 = vpack.c.b16 %v894, %v890
    %v1299 = vpack.c.b16 %v895, %v891
    %v1300 = vpack.c.b16 %v900, %v896
    %v1301 = vpack.c.b16 %v901, %v897
    %v1302 = vpack.c.b16 %v902, %v898
    %v1303 = vpack.c.b16 %v903, %v899
    %v1304 = vpack.c.b16 %v908, %v904
    %v1305 = vpack.c.b16 %v909, %v905
    %v1306 = vpack.c.b16 %v910, %v906
    %v1307 = vpack.c.b16 %v911, %v907
    %v1308 = vpack.c.b16 %v916, %v912
    %v1309 = vpack.c.b16 %v917, %v913
    %v1310 = vpack.c.b16 %v918, %v914
    %v1311 = vpack.c.b16 %v919, %v915
    %v1312 = vpack.c.b16 %v924, %v920
    %v1313 = vpack.c.b16 %v925, %v921
    %v1314 = vpack.c.b16 %v926, %v922
    %v1315 = vpack.c.b16 %v927, %v923
    %v1316 = vpack.c.b16 %v932, %v928
    %v1317 = vpack.c.b16 %v933, %v929
    %v1318 = vpack.c.b16 %v934, %v930
    %v1319 = vpack.c.b16 %v935, %v931
    %v1320 = vpack.c.b16 %v940, %v936
    %v1321 = vpack.c.b16 %v941, %v937
    %v1322 = vpack.c.b16 %v942, %v938
    %v1323 = vpack.c.b16 %v943, %v939
    %v1324 = vpack.c.b16 %v948, %v944
    %v1325 = vpack.c.b16 %v949, %v945
    %v1326 = vpack.c.b16 %v950, %v946
    %v1327 = vpack.c.b16 %v951, %v947
    %v1328 = vpack.c.b16 %v956, %v952
    %v1329 = vpack.c.b16 %v957, %v953
    %v1330 = vpack.c.b16 %v958, %v954
    %v1331 = vpack.c.b16 %v959, %v955
    %v1332 = vpack.c.b16 %v964, %v960
    %v1333 = vpack.c.b16 %v965, %v961
    %v1334 = vpack.c.b16 %v966, %v962
    %v1335 = vpack.c.b16 %v967, %v963
    %v1336 = vpack.c.b16 %v972, %v968
    %v1337 = vpack.c.b16 %v973, %v969
    %v1338 = vpack.c.b16 %v974, %v970
    %v1339 = vpack.c.b16 %v975, %v971
    %v1340 = vpack.c.b16 %v980, %v976
    %v1341 = vpack.c.b16 %v981, %v977
    %v1342 = vpack.c.b16 %v982, %v978
    %v1343 = vpack.c.b16 %v983, %v979
    %v1344 = vpack.c.b16 %v988, %v984
    %v1345 = vpack.c.b16 %v989, %v985
    %v1346 = vpack.c.b16 %v990, %v986
    %v1347 = vpack.c.b16 %v991, %v987
    %v1348 = vpack.c.b16 %v996, %v992
    %v1349 = vpack.c.b16 %v997, %v993
    %v1350 = vpack.c.b16 %v998, %v994
    %v1351 = vpack.c.b16 %v999, %v995
    %v1352 = vpack.c.b16 %v1004, %v1000
    %v1353 = vpack.c.b16 %v1005, %v1001
    %v1354 = vpack.c.b16 %v1006, %v1002
    %v1355 = vpack.c.b16 %v1007, %v1003
    %v1356 = vpack.c.b16 %v1012, %v1008
    %v1357 = vpack.c.b16 %v1013, %v1009
    %v1358 = vpack.c.b16 %v1014, %v1010
    %v1359 = vpack.c.b16 %v1015, %v1011
    %v1360 = vpack.c.b16 %v1020, %v1016
    %v1361 = vpack.c.b16 %v1021, %v1017
    %v1362 = vpack.c.b16 %v1022, %v1018
    %v1363 = vpack.c.b16 %v1023, %v1019
    %v1364 = vpack.c.b16 %v1028, %v1024
    %v1365 = vpack.c.b16 %v1029, %v1025
    %v1366 = vpack.c.b16 %v1030, %v1026
    %v1367 = vpack.c.b16 %v1031, %v1027
    %v1368 = vpack.c.b16 %v1036, %v1032
    %v1369 = vpack.c.b16 %v1037, %v1033
    %v1370 = vpack.c.b16 %v1038, %v1034
    %v1371 = vpack.c.b16 %v1039, %v1035
    %v1372 = vpack.c.b16 %v1044, %v1040
    %v1373 = vpack.c.b16 %v1045, %v1041
    %v1374 = vpack.c.b16 %v1046, %v1042
    %v1375 = vpack.c.b16 %v1047, %v1043
    %v1376 = vpack.c.b16 %v1052, %v1048
    %v1377 = vpack.c.b16 %v1053, %v1049
    %v1378 = vpack.c.b16 %v1054, %v1050
    %v1379 = vpack.c.b16 %v1055, %v1051
    %v1380 = vpack.c.b16 %v1060, %v1056
    %v1381 = vpack.c.b16 %v1061, %v1057
    %v1382 = vpack.c.b16 %v1062, %v1058
    %v1383 = vpack.c.b16 %v1063, %v1059
    %v1384 = vpack.c.b16 %v1068, %v1064
    %v1385 = vpack.c.b16 %v1069, %v1065
    %v1386 = vpack.c.b16 %v1070, %v1066
    %v1387 = vpack.c.b16 %v1071, %v1067
    %v1388 = vpack.c.b16 %v1076, %v1072
    %v1389 = vpack.c.b16 %v1077, %v1073
    %v1390 = vpack.c.b16 %v1078, %v1074
    %v1391 = vpack.c.b16 %v1079, %v1075
    %v1392 = vpack.c.b16 %v1084, %v1080
    %v1393 = vpack.c.b16 %v1085, %v1081
    %v1394 = vpack.c.b16 %v1086, %v1082
    %v1395 = vpack.c.b16 %v1087, %v1083
    %v1396 = vpack.c.b16 %v1092, %v1088
    %v1397 = vpack.c.b16 %v1093, %v1089
    %v1398 = vpack.c.b16 %v1094, %v1090
    %v1399 = vpack.c.b16 %v1095, %v1091
    %v1400 = vpack.c.b16 %v1100, %v1096
    %v1401 = vpack.c.b16 %v1101, %v1097
    %v1402 = vpack.c.b16 %v1102, %v1098
    %v1403 = vpack.c.b16 %v1103, %v1099
    %v1404 = vpack.c.b16 %v1108, %v1104
    %v1405 = vpack.c.b16 %v1109, %v1105
    %v1406 = vpack.c.b16 %v1110, %v1106
    %v1407 = vpack.c.b16 %v1111, %v1107
    %v1408 = vpack.c.b16 %v1116, %v1112
    %v1409 = vpack.c.b16 %v1117, %v1113
    %v1410 = vpack.c.b16 %v1118, %v1114
    %v1411 = vpack.c.b16 %v1119, %v1115
    %v1412 = vpack.c.b16 %v1124, %v1120
    %v1413 = vpack.c.b16 %v1125, %v1121
    %v1414 = vpack.c.b16 %v1126, %v1122
    %v1415 = vpack.c.b16 %v1127, %v1123
    %v1416 = vpack.c.b16 %v1132, %v1128
    %v1417 = vpack.c.b16 %v1133, %v1129
    %v1418 = vpack.c.b16 %v1134, %v1130
    %v1419 = vpack.c.b16 %v1135, %v1131
    %v1420 = vpack.c.b16 %v1140, %v1136
    %v1421 = vpack.c.b16 %v1141, %v1137
    %v1422 = vpack.c.b16 %v1142, %v1138
    %v1423 = vpack.c.b16 %v1143, %v1139
    %v1424 = vpack.c.b16 %v1148, %v1144
    %v1425 = vpack.c.b16 %v1149, %v1145
    %v1426 = vpack.c.b16 %v1150, %v1146
    %v1427 = vpack.c.b16 %v1151, %v1147
    %v1428 = vpack.c.b16 %v1156, %v1152
    %v1429 = vpack.c.b16 %v1157, %v1153
    %v1430 = vpack.c.b16 %v1158, %v1154
    %v1431 = vpack.c.b16 %v1159, %v1155
    %v1432 = vpack.c.b16 %v1164, %v1160
    %v1433 = vpack.c.b16 %v1165, %v1161
    %v1434 = vpack.c.b16 %v1166, %v1162
    %v1435 = vpack.c.b16 %v1167, %v1163
    %v1436 = vpack.c.b16 %v1172, %v1168
    %v1437 = vpack.c.b16 %v1173, %v1169
    %v1438 = vpack.c.b16 %v1174, %v1170
    %v1439 = vpack.c.b16 %v1175, %v1171
    %v1440 = vpack.c.b16 %v1180, %v1176
    %v1441 = vpack.c.b16 %v1181, %v1177
    %v1442 = vpack.c.b16 %v1182, %v1178
    %v1443 = vpack.c.b16 %v1183, %v1179
    %v1444 = vpack.c.b16 %v1188, %v1184
    %v1445 = vpack.c.b16 %v1189, %v1185
    %v1446 = vpack.c.b16 %v1190, %v1186
    %v1447 = vpack.c.b16 %v1191, %v1187
    %1704 = vmatprep.subr.bf16.mxu0 %v1221
    %1705 = vmatpush1.bf16.msra.mxu0 %v1220
    %1706 = vmatprep.subr.bf16.mxu0 %v1217
    %1707 = vmatpush1.bf16.msra.mxu0 %v1216
    %1708 = vmatprep.subr.bf16.mxu0 %v1213
    %1709 = vmatpush1.bf16.msra.mxu0 %v1212
    %1710 = vmatprep.subr.bf16.mxu0 %v1209
    %1711 = vmatpush1.bf16.msra.mxu0 %v1208
    %1712 = vmatprep.subr.bf16.mxu0 %v1205
    %1713 = vmatpush1.bf16.msra.mxu0 %v1204
    %1714 = vmatprep.subr.bf16.mxu0 %v1201
    %1715 = vmatpush1.bf16.msra.mxu0 %v1200
    %1716 = vmatprep.subr.bf16.mxu0 %v1197
    %1717 = vmatpush1.bf16.msra.mxu0 %v1196
    %1718 = vmatprep.subr.bf16.mxu0 %v1193
    %1719 = vmatpush1.bf16.msra.mxu0 %v1192
    %1720 = vmatprep.subr.bf16.mxu0 %v1253
    %1721 = vmatpush2.bf16.msra.mxu0 %v1252
    %1722 = vmatprep.subr.bf16.mxu0 %v1249
    %1723 = vmatpush2.bf16.msra.mxu0 %v1248
    %1724 = vmatprep.subr.bf16.mxu0 %v1245
    %1725 = vmatpush2.bf16.msra.mxu0 %v1244
    %1726 = vmatprep.subr.bf16.mxu0 %v1241
    %1727 = vmatpush2.bf16.msra.mxu0 %v1240
    %1728 = vmatprep.subr.bf16.mxu0 %v1237
    %1729 = vmatpush2.bf16.msra.mxu0 %v1236
    %1730 = vmatprep.subr.bf16.mxu0 %v1233
    %1731 = vmatpush2.bf16.msra.mxu0 %v1232
    %1732 = vmatprep.subr.bf16.mxu0 %v1229
    %1733 = vmatpush2.bf16.msra.mxu0 %v1228
    %1734 = vmatprep.subr.bf16.mxu0 %v1225
    %1735 = vmatpush2.bf16.msra.mxu0 %v1224
    %1736 = vmatprep.mubr.bf16.mxu0 %v139
    %1737 = vmatmul.mubr.bf16.gmra.mxu0 %v138
    %v1738 = vpop.f32.mrf.mxu0
    %v1739 = vadd.f32 %v407, %v1738
    %v1740 = vpop.f32.mrf.mxu0
    %v1741 = vadd.f32 %v411, %v1740
    %v1742 = vpop.f32.mrf.mxu0
    %v1743 = vpop.f32.mrf.mxu0
    %1744 = vdwg.mxu0
    %1745 = vmatprep.subr.bf16.mxu0 %v1285
    %1746 = vmatpush1.bf16.msra.mxu0 %v1284
    %1747 = vmatprep.subr.bf16.mxu0 %v1281
    %1748 = vmatpush1.bf16.msra.mxu0 %v1280
    %1749 = vmatprep.subr.bf16.mxu0 %v1277
    %1750 = vmatpush1.bf16.msra.mxu0 %v1276
    %1751 = vmatprep.subr.bf16.mxu0 %v1273
    %1752 = vmatpush1.bf16.msra.mxu0 %v1272
    %1753 = vmatprep.subr.bf16.mxu0 %v1269
    %1754 = vmatpush1.bf16.msra.mxu0 %v1268
    %1755 = vmatprep.subr.bf16.mxu0 %v1265
    %1756 = vmatpush1.bf16.msra.mxu0 %v1264
    %1757 = vmatprep.subr.bf16.mxu0 %v1261
    %1758 = vmatpush1.bf16.msra.mxu0 %v1260
    %1759 = vmatprep.subr.bf16.mxu0 %v1257
    %1760 = vmatpush1.bf16.msra.mxu0 %v1256
    %1761 = vmatprep.subr.bf16.mxu0 %v1317
    %1762 = vmatpush2.bf16.msra.mxu0 %v1316
    %1763 = vmatprep.subr.bf16.mxu0 %v1313
    %1764 = vmatpush2.bf16.msra.mxu0 %v1312
    %1765 = vmatprep.subr.bf16.mxu0 %v1309
    %1766 = vmatpush2.bf16.msra.mxu0 %v1308
    %1767 = vmatprep.subr.bf16.mxu0 %v1305
    %1768 = vmatpush2.bf16.msra.mxu0 %v1304
    %1769 = vmatprep.subr.bf16.mxu0 %v1301
    %1770 = vmatpush2.bf16.msra.mxu0 %v1300
    %1771 = vmatprep.subr.bf16.mxu0 %v1297
    %1772 = vmatpush2.bf16.msra.mxu0 %v1296
    %1773 = vmatprep.subr.bf16.mxu0 %v1293
    %1774 = vmatpush2.bf16.msra.mxu0 %v1292
    %1775 = vmatprep.subr.bf16.mxu0 %v1289
    %1776 = vmatpush2.bf16.msra.mxu0 %v1288
    %1777 = vmatprep.mubr.bf16.mxu0 %v141
    %1778 = vmatmul.mubr.bf16.gmra.mxu0 %v140
    %v1779 = vpop.f32.mrf.mxu0
    %v1780 = vadd.f32 %v1739, %v1779
    %v1781 = vpop.f32.mrf.mxu0
    %v1782 = vadd.f32 %v1741, %v1781
    %v1783 = vpop.f32.mrf.mxu0
    %v1784 = vpop.f32.mrf.mxu0
    %1785 = vdwg.mxu0
    %1786 = vmatprep.subr.bf16.mxu0 %v1349
    %1787 = vmatpush1.bf16.msra.mxu0 %v1348
    %1788 = vmatprep.subr.bf16.mxu0 %v1345
    %1789 = vmatpush1.bf16.msra.mxu0 %v1344
    %1790 = vmatprep.subr.bf16.mxu0 %v1341
    %1791 = vmatpush1.bf16.msra.mxu0 %v1340
    %1792 = vmatprep.subr.bf16.mxu0 %v1337
    %1793 = vmatpush1.bf16.msra.mxu0 %v1336
    %1794 = vmatprep.subr.bf16.mxu0 %v1333
    %1795 = vmatpush1.bf16.msra.mxu0 %v1332
    %1796 = vmatprep.subr.bf16.mxu0 %v1329
    %1797 = vmatpush1.bf16.msra.mxu0 %v1328
    %1798 = vmatprep.subr.bf16.mxu0 %v1325
    %1799 = vmatpush1.bf16.msra.mxu0 %v1324
    %1800 = vmatprep.subr.bf16.mxu0 %v1321
    %1801 = vmatpush1.bf16.msra.mxu0 %v1320
    %1802 = vmatprep.subr.bf16.mxu0 %v1381
    %1803 = vmatpush2.bf16.msra.mxu0 %v1380
    %1804 = vmatprep.subr.bf16.mxu0 %v1377
    %1805 = vmatpush2.bf16.msra.mxu0 %v1376
    %1806 = vmatprep.subr.bf16.mxu0 %v1373
    %1807 = vmatpush2.bf16.msra.mxu0 %v1372
    %1808 = vmatprep.subr.bf16.mxu0 %v1369
    %1809 = vmatpush2.bf16.msra.mxu0 %v1368
    %1810 = vmatprep.subr.bf16.mxu0 %v1365
    %1811 = vmatpush2.bf16.msra.mxu0 %v1364
    %1812 = vmatprep.subr.bf16.mxu0 %v1361
    %1813 = vmatpush2.bf16.msra.mxu0 %v1360
    %1814 = vmatprep.subr.bf16.mxu0 %v1357
    %1815 = vmatpush2.bf16.msra.mxu0 %v1356
    %1816 = vmatprep.subr.bf16.mxu0 %v1353
    %1817 = vmatpush2.bf16.msra.mxu0 %v1352
    %1818 = vmatprep.mubr.bf16.mxu0 %v143
    %1819 = vmatmul.mubr.bf16.gmra.mxu0 %v142
    %v1820 = vpop.f32.mrf.mxu0
    %v1821 = vadd.f32 %v1780, %v1820
    %v1822 = vpop.f32.mrf.mxu0
    %v1823 = vadd.f32 %v1782, %v1822
    %v1824 = vpop.f32.mrf.mxu0
    %v1825 = vpop.f32.mrf.mxu0
    %1826 = vdwg.mxu0
    %1827 = vmatprep.subr.bf16.mxu0 %v1413
    %1828 = vmatpush1.bf16.msra.mxu0 %v1412
    %1829 = vmatprep.subr.bf16.mxu0 %v1409
    %1830 = vmatpush1.bf16.msra.mxu0 %v1408
    %1831 = vmatprep.subr.bf16.mxu0 %v1405
    %1832 = vmatpush1.bf16.msra.mxu0 %v1404
    %1833 = vmatprep.subr.bf16.mxu0 %v1401
    %1834 = vmatpush1.bf16.msra.mxu0 %v1400
    %1835 = vmatprep.subr.bf16.mxu0 %v1397
    %1836 = vmatpush1.bf16.msra.mxu0 %v1396
    %1837 = vmatprep.subr.bf16.mxu0 %v1393
    %1838 = vmatpush1.bf16.msra.mxu0 %v1392
    %1839 = vmatprep.subr.bf16.mxu0 %v1389
    %1840 = vmatpush1.bf16.msra.mxu0 %v1388
    %1841 = vmatprep.subr.bf16.mxu0 %v1385
    %1842 = vmatpush1.bf16.msra.mxu0 %v1384
    %1843 = vmatprep.subr.bf16.mxu0 %v1445
    %1844 = vmatpush2.bf16.msra.mxu0 %v1444
    %1845 = vmatprep.subr.bf16.mxu0 %v1441
    %1846 = vmatpush2.bf16.msra.mxu0 %v1440
    %1847 = vmatprep.subr.bf16.mxu0 %v1437
    %1848 = vmatpush2.bf16.msra.mxu0 %v1436
    %1849 = vmatprep.subr.bf16.mxu0 %v1433
    %1850 = vmatpush2.bf16.msra.mxu0 %v1432
    %1851 = vmatprep.subr.bf16.mxu0 %v1429
    %1852 = vmatpush2.bf16.msra.mxu0 %v1428
    %1853 = vmatprep.subr.bf16.mxu0 %v1425
    %1854 = vmatpush2.bf16.msra.mxu0 %v1424
    %1855 = vmatprep.subr.bf16.mxu0 %v1421
    %1856 = vmatpush2.bf16.msra.mxu0 %v1420
    %1857 = vmatprep.subr.bf16.mxu0 %v1417
    %1858 = vmatpush2.bf16.msra.mxu0 %v1416
    %1859 = vmatprep.mubr.bf16.mxu0 %v145
    %1860 = vmatmul.mubr.bf16.gmra.mxu0 %v144
    %v1861 = vpop.f32.mrf.mxu0
    %v1862 = vadd.f32 %v1821, %v1861
    %v1863 = vpop.f32.mrf.mxu0
    %v1864 = vadd.f32 %v1823, %v1863
    %v1865 = vpop.f32.mrf.mxu0
    %v1866 = vpop.f32.mrf.mxu0
    %1867 = vdwg.mxu0
    %1868 = vmatprep.subr.bf16.mxu0 %v1223
    %1869 = vmatpush1.bf16.msra.mxu0 %v1222
    %1870 = vmatprep.subr.bf16.mxu0 %v1219
    %1871 = vmatpush1.bf16.msra.mxu0 %v1218
    %1872 = vmatprep.subr.bf16.mxu0 %v1215
    %1873 = vmatpush1.bf16.msra.mxu0 %v1214
    %1874 = vmatprep.subr.bf16.mxu0 %v1211
    %1875 = vmatpush1.bf16.msra.mxu0 %v1210
    %1876 = vmatprep.subr.bf16.mxu0 %v1207
    %1877 = vmatpush1.bf16.msra.mxu0 %v1206
    %1878 = vmatprep.subr.bf16.mxu0 %v1203
    %1879 = vmatpush1.bf16.msra.mxu0 %v1202
    %1880 = vmatprep.subr.bf16.mxu0 %v1199
    %1881 = vmatpush1.bf16.msra.mxu0 %v1198
    %1882 = vmatprep.subr.bf16.mxu0 %v1195
    %1883 = vmatpush1.bf16.msra.mxu0 %v1194
    %1884 = vmatprep.subr.bf16.mxu0 %v1255
    %1885 = vmatpush2.bf16.msra.mxu0 %v1254
    %1886 = vmatprep.subr.bf16.mxu0 %v1251
    %1887 = vmatpush2.bf16.msra.mxu0 %v1250
    %1888 = vmatprep.subr.bf16.mxu0 %v1247
    %1889 = vmatpush2.bf16.msra.mxu0 %v1246
    %1890 = vmatprep.subr.bf16.mxu0 %v1243
    %1891 = vmatpush2.bf16.msra.mxu0 %v1242
    %1892 = vmatprep.subr.bf16.mxu0 %v1239
    %1893 = vmatpush2.bf16.msra.mxu0 %v1238
    %1894 = vmatprep.subr.bf16.mxu0 %v1235
    %1895 = vmatpush2.bf16.msra.mxu0 %v1234
    %1896 = vmatprep.subr.bf16.mxu0 %v1231
    %1897 = vmatpush2.bf16.msra.mxu0 %v1230
    %1898 = vmatprep.subr.bf16.mxu0 %v1227
    %1899 = vmatpush2.bf16.msra.mxu0 %v1226
    %1900 = vmatprep.mubr.bf16.mxu0 %v139
    %1901 = vmatmul.mubr.bf16.gmra.mxu0 %v138
    %v1902 = vpop.f32.mrf.mxu0
    %v1903 = vadd.f32 %v415, %v1902
    %v1904 = vpop.f32.mrf.mxu0
    %v1905 = vadd.f32 %v419, %v1904
    %v1906 = vpop.f32.mrf.mxu0
    %v1907 = vpop.f32.mrf.mxu0
    %1908 = vdwg.mxu0
    %1909 = vmatprep.subr.bf16.mxu0 %v1287
    %1910 = vmatpush1.bf16.msra.mxu0 %v1286
    %1911 = vmatprep.subr.bf16.mxu0 %v1283
    %1912 = vmatpush1.bf16.msra.mxu0 %v1282
    %1913 = vmatprep.subr.bf16.mxu0 %v1279
    %1914 = vmatpush1.bf16.msra.mxu0 %v1278
    %1915 = vmatprep.subr.bf16.mxu0 %v1275
    %1916 = vmatpush1.bf16.msra.mxu0 %v1274
    %1917 = vmatprep.subr.bf16.mxu0 %v1271
    %1918 = vmatpush1.bf16.msra.mxu0 %v1270
    %1919 = vmatprep.subr.bf16.mxu0 %v1267
    %1920 = vmatpush1.bf16.msra.mxu0 %v1266
    %1921 = vmatprep.subr.bf16.mxu0 %v1263
    %1922 = vmatpush1.bf16.msra.mxu0 %v1262
    %1923 = vmatprep.subr.bf16.mxu0 %v1259
    %1924 = vmatpush1.bf16.msra.mxu0 %v1258
    %1925 = vmatprep.subr.bf16.mxu0 %v1319
    %1926 = vmatpush2.bf16.msra.mxu0 %v1318
    %1927 = vmatprep.subr.bf16.mxu0 %v1315
    %1928 = vmatpush2.bf16.msra.mxu0 %v1314
    %1929 = vmatprep.subr.bf16.mxu0 %v1311
    %1930 = vmatpush2.bf16.msra.mxu0 %v1310
    %1931 = vmatprep.subr.bf16.mxu0 %v1307
    %1932 = vmatpush2.bf16.msra.mxu0 %v1306
    %1933 = vmatprep.subr.bf16.mxu0 %v1303
    %1934 = vmatpush2.bf16.msra.mxu0 %v1302
    %1935 = vmatprep.subr.bf16.mxu0 %v1299
    %1936 = vmatpush2.bf16.msra.mxu0 %v1298
    %1937 = vmatprep.subr.bf16.mxu0 %v1295
    %1938 = vmatpush2.bf16.msra.mxu0 %v1294
    %1939 = vmatprep.subr.bf16.mxu0 %v1291
    %1940 = vmatpush2.bf16.msra.mxu0 %v1290
    %1941 = vmatprep.mubr.bf16.mxu0 %v141
    %1942 = vmatmul.mubr.bf16.gmra.mxu0 %v140
    %v1943 = vpop.f32.mrf.mxu0
    %v1944 = vadd.f32 %v1903, %v1943
    %v1945 = vpop.f32.mrf.mxu0
    %v1946 = vadd.f32 %v1905, %v1945
    %v1947 = vpop.f32.mrf.mxu0
    %v1948 = vpop.f32.mrf.mxu0
    %1949 = vdwg.mxu0
    %1950 = vmatprep.subr.bf16.mxu0 %v1351
    %1951 = vmatpush1.bf16.msra.mxu0 %v1350
    %1952 = vmatprep.subr.bf16.mxu0 %v1347
    %1953 = vmatpush1.bf16.msra.mxu0 %v1346
    %1954 = vmatprep.subr.bf16.mxu0 %v1343
    %1955 = vmatpush1.bf16.msra.mxu0 %v1342
    %1956 = vmatprep.subr.bf16.mxu0 %v1339
    %1957 = vmatpush1.bf16.msra.mxu0 %v1338
    %1958 = vmatprep.subr.bf16.mxu0 %v1335
    %1959 = vmatpush1.bf16.msra.mxu0 %v1334
    %1960 = vmatprep.subr.bf16.mxu0 %v1331
    %1961 = vmatpush1.bf16.msra.mxu0 %v1330
    %1962 = vmatprep.subr.bf16.mxu0 %v1327
    %1963 = vmatpush1.bf16.msra.mxu0 %v1326
    %1964 = vmatprep.subr.bf16.mxu0 %v1323
    %1965 = vmatpush1.bf16.msra.mxu0 %v1322
    %1966 = vmatprep.subr.bf16.mxu0 %v1383
    %1967 = vmatpush2.bf16.msra.mxu0 %v1382
    %1968 = vmatprep.subr.bf16.mxu0 %v1379
    %1969 = vmatpush2.bf16.msra.mxu0 %v1378
    %1970 = vmatprep.subr.bf16.mxu0 %v1375
    %1971 = vmatpush2.bf16.msra.mxu0 %v1374
    %1972 = vmatprep.subr.bf16.mxu0 %v1371
    %1973 = vmatpush2.bf16.msra.mxu0 %v1370
    %1974 = vmatprep.subr.bf16.mxu0 %v1367
    %1975 = vmatpush2.bf16.msra.mxu0 %v1366
    %1976 = vmatprep.subr.bf16.mxu0 %v1363
    %1977 = vmatpush2.bf16.msra.mxu0 %v1362
    %1978 = vmatprep.subr.bf16.mxu0 %v1359
    %1979 = vmatpush2.bf16.msra.mxu0 %v1358
    %1980 = vmatprep.subr.bf16.mxu0 %v1355
    %1981 = vmatpush2.bf16.msra.mxu0 %v1354
    %1982 = vmatprep.mubr.bf16.mxu0 %v143
    %1983 = vmatmul.mubr.bf16.gmra.mxu0 %v142
    %v1984 = vpop.f32.mrf.mxu0
    %v1985 = vadd.f32 %v1944, %v1984
    %v1986 = vpop.f32.mrf.mxu0
    %v1987 = vadd.f32 %v1946, %v1986
    %v1988 = vpop.f32.mrf.mxu0
    %v1989 = vpop.f32.mrf.mxu0
    %1990 = vdwg.mxu0
    %1991 = vmatprep.subr.bf16.mxu0 %v1415
    %1992 = vmatpush1.bf16.msra.mxu0 %v1414
    %1993 = vmatprep.subr.bf16.mxu0 %v1411
    %1994 = vmatpush1.bf16.msra.mxu0 %v1410
    %1995 = vmatprep.subr.bf16.mxu0 %v1407
    %1996 = vmatpush1.bf16.msra.mxu0 %v1406
    %1997 = vmatprep.subr.bf16.mxu0 %v1403
    %1998 = vmatpush1.bf16.msra.mxu0 %v1402
    %1999 = vmatprep.subr.bf16.mxu0 %v1399
    %2000 = vmatpush1.bf16.msra.mxu0 %v1398
    %2001 = vmatprep.subr.bf16.mxu0 %v1395
    %2002 = vmatpush1.bf16.msra.mxu0 %v1394
    %2003 = vmatprep.subr.bf16.mxu0 %v1391
    %2004 = vmatpush1.bf16.msra.mxu0 %v1390
    %2005 = vmatprep.subr.bf16.mxu0 %v1387
    %2006 = vmatpush1.bf16.msra.mxu0 %v1386
    %2007 = vmatprep.subr.bf16.mxu0 %v1447
    %2008 = vmatpush2.bf16.msra.mxu0 %v1446
    %2009 = vmatprep.subr.bf16.mxu0 %v1443
    %2010 = vmatpush2.bf16.msra.mxu0 %v1442
    %2011 = vmatprep.subr.bf16.mxu0 %v1439
    %2012 = vmatpush2.bf16.msra.mxu0 %v1438
    %2013 = vmatprep.subr.bf16.mxu0 %v1435
    %2014 = vmatpush2.bf16.msra.mxu0 %v1434
    %2015 = vmatprep.subr.bf16.mxu0 %v1431
    %2016 = vmatpush2.bf16.msra.mxu0 %v1430
    %2017 = vmatprep.subr.bf16.mxu0 %v1427
    %2018 = vmatpush2.bf16.msra.mxu0 %v1426
    %2019 = vmatprep.subr.bf16.mxu0 %v1423
    %2020 = vmatpush2.bf16.msra.mxu0 %v1422
    %2021 = vmatprep.subr.bf16.mxu0 %v1419
    %2022 = vmatpush2.bf16.msra.mxu0 %v1418
    %2023 = vmatprep.mubr.bf16.mxu0 %v145
    %2024 = vmatmul.mubr.bf16.gmra.mxu0 %v144
    %v2025 = vpop.f32.mrf.mxu0
    %v2026 = vadd.f32 %v1985, %v2025
    %v2027 = vpop.f32.mrf.mxu0
    %v2028 = vadd.f32 %v1987, %v2027
    %v2029 = vpop.f32.mrf.mxu0
    %v2030 = vpop.f32.mrf.mxu0
    %2031 = vdwg.mxu0
    %v2032 = vmul.f32 %v1862, 1.702
    %v2033 = vmul.f32 %v1864, 1.702
    %v2034 = vmul.f32 %v2026, 1.702
    %v2035 = vmul.f32 %v2028, 1.702
    %v2036 = vxor.u32 %v2032, 2147483648
    %v2037 = vxor.u32 %v2033, 2147483648
    %v2038 = vxor.u32 %v2034, 2147483648
    %v2039 = vxor.u32 %v2035, 2147483648
    %v2040 = vmul.f32 %v2036, 1.442695
    %v2041 = vpow.pop %v2040
    %v2042 = vmul.f32 %v2037, 1.442695
    %v2043 = vpow.pop %v2042
    %v2044 = vmul.f32 %v2038, 1.442695
    %v2045 = vpow.pop %v2044
    %v2046 = vmul.f32 %v2039, 1.442695
    %v2047 = vpow.pop %v2046
    %v2048 = vadd.f32 %v2041, 1.0
    %v2049 = vadd.f32 %v2043, 1.0
    %v2050 = vadd.f32 %v2045, 1.0
    %v2051 = vadd.f32 %v2047, 1.0
    %v2052 = vrcp.pop %v2048
    %v2053 = vmul.f32 1.0, %v2052
    %v2054 = vrcp.pop %v2049
    %v2055 = vmul.f32 1.0, %v2054
    %v2056 = vrcp.pop %v2050
    %v2057 = vmul.f32 1.0, %v2056
    %v2058 = vrcp.pop %v2051
    %v2059 = vmul.f32 1.0, %v2058
    %v2060 = vmul.f32 %v1862, %v2053
    %v2061 = vmul.f32 %v1864, %v2055
    %v2062 = vmul.f32 %v2026, %v2057
    %v2063 = vmul.f32 %v2028, %v2059
    %v2064 = vadd.f32 %v2060, %v2061
    %v2065 = vadd.f32 %v2064, %v2062
    %v2066 = vadd.f32 %v2065, %v2063
    %v2067 = vmul.f32 %v2066, 0.25
    %v2068 = vpack.c.bf16 %v2067, %v2067
    %v2069 = vld [vmem:[#allocation8] sm:$0xf]
    %v2070 = vld [vmem:[#allocation8 + $0x4] sm:$0xf]
    %v2071 = vld [vmem:[#allocation8 + $0x8] sm:$0xf]
    %v2072 = vld [vmem:[#allocation8 + $0xc] sm:$0xf]
    %v2073 = vld [vmem:[#allocation8 + $0x10] sm:$0xf]
    %v2074 = vld [vmem:[#allocation8 + $0x14] sm:$0xf]
    %v2075 = vld [vmem:[#allocation8 + $0x18] sm:$0xf]
    %v2076 = vld [vmem:[#allocation8 + $0x1c] sm:$0xf]
    %v2077 = vld [vmem:[#allocation8 + $0x20] sm:$0xf]
    %v2078 = vld [vmem:[#allocation8 + $0x24] sm:$0xf]
    %v2079 = vld [vmem:[#allocation8 + $0x28] sm:$0xf]
    %v2080 = vld [vmem:[#allocation8 + $0x2c] sm:$0xf]
    %v2081 = vld [vmem:[#allocation8 + $0x30] sm:$0xf]
    %v2082 = vld [vmem:[#allocation8 + $0x34] sm:$0xf]
    %v2083 = vld [vmem:[#allocation8 + $0x38] sm:$0xf]
    %v2084 = vld [vmem:[#allocation8 + $0x3c] sm:$0xf]
    %v2085 = vld [vmem:[%s4] sm:$0x1]
    %v2087 = vlaneseq
    %v2088 = vshrl.u32 %v2087, 7
    %v2089 = vsub.s32 0, %v2088
    %v2090 = vrot.slane %v2085, %v2089
    %v2108 = vunpack.c.l.b16 %v2069
    %v2109 = vunpack.c.l.b16 %v2070
    %v2110 = vunpack.c.l.b16 %v2071
    %v2111 = vunpack.c.l.b16 %v2072
    %v2112 = vunpack.c.l.b16 %v2073
    %v2113 = vunpack.c.l.b16 %v2074
    %v2114 = vunpack.c.l.b16 %v2075
    %v2115 = vunpack.c.l.b16 %v2076
    %v2116 = vunpack.c.l.b16 %v2077
    %v2117 = vunpack.c.l.b16 %v2078
    %v2118 = vunpack.c.l.b16 %v2079
    %v2119 = vunpack.c.l.b16 %v2080
    %v2120 = vunpack.c.l.b16 %v2081
    %v2121 = vunpack.c.l.b16 %v2082
    %v2122 = vunpack.c.l.b16 %v2083
    %v2123 = vunpack.c.l.b16 %v2084
    %v2124 = vpack.c.b16 %v2109, %v2108
    %v2125 = vpack.c.b16 %v2111, %v2110
    %v2126 = vpack.c.b16 %v2113, %v2112
    %v2127 = vpack.c.b16 %v2115, %v2114
    %v2128 = vpack.c.b16 %v2117, %v2116
    %v2129 = vpack.c.b16 %v2119, %v2118
    %v2130 = vpack.c.b16 %v2121, %v2120
    %v2131 = vpack.c.b16 %v2123, %v2122
    %2140 = vmatprep.subr.bf16.mxu0 0
    %2141 = vmatpush1.bf16.msra.mxu0 %v2131
    %2142 = vmatprep.subr.bf16.mxu0 0
    %2143 = vmatpush1.bf16.msra.mxu0 %v2130
    %2144 = vmatprep.subr.bf16.mxu0 0
    %2145 = vmatpush1.bf16.msra.mxu0 %v2129
    %2146 = vmatprep.subr.bf16.mxu0 0
    %2147 = vmatpush1.bf16.msra.mxu0 %v2128
    %2148 = vmatprep.subr.bf16.mxu0 0
    %2149 = vmatpush1.bf16.msra.mxu0 %v2127
    %2150 = vmatprep.subr.bf16.mxu0 0
    %2151 = vmatpush1.bf16.msra.mxu0 %v2126
    %2152 = vmatprep.subr.bf16.mxu0 0
    %2153 = vmatpush1.bf16.msra.mxu0 %v2125
    %2154 = vmatprep.subr.bf16.mxu0 0
    %2155 = vmatpush1.bf16.msra.mxu0 %v2124
    %2156 = vmatprep.subr.bf16.mxu0 0
    %2157 = vmatpush2.bf16.msra.mxu0 0
    %2158 = vmatprep.subr.bf16.mxu0 0
    %2159 = vmatpush2.bf16.msra.mxu0 0
    %2160 = vmatprep.subr.bf16.mxu0 0
    %2161 = vmatpush2.bf16.msra.mxu0 0
    %2162 = vmatprep.subr.bf16.mxu0 0
    %2163 = vmatpush2.bf16.msra.mxu0 0
    %2164 = vmatprep.subr.bf16.mxu0 0
    %2165 = vmatpush2.bf16.msra.mxu0 0
    %2166 = vmatprep.subr.bf16.mxu0 0
    %2167 = vmatpush2.bf16.msra.mxu0 0
    %2168 = vmatprep.subr.bf16.mxu0 0
    %2169 = vmatpush2.bf16.msra.mxu0 0
    %2170 = vmatprep.subr.bf16.mxu0 0
    %2171 = vmatpush2.bf16.msra.mxu0 0
    %2172 = vmatprep.mubr.bf16.mxu0 0
    %2173 = vmatmul.mubr.bf16.gmra.mxu0 %v2068
    %v2174 = vpop.f32.mrf.mxu0
    %v2175 = vadd.f32 %v2090, %v2174
    %v2176 = vpop.f32.mrf.mxu0
    %v2177 = vpop.f32.mrf.mxu0
    %v2178 = vpop.f32.mrf.mxu0
    %2179 = vdwg.mxu0
    %v2180 = vmul.f32 %v2175, %v2175
    %vm2181 = vcmask 1041408
    %v2182 = vsel %vm2181, %v2180, 0.0
    %2183 = vadd.xlane.f32.xlu0 %v2182
    %v2184 = vpop.xlane.xlu0 %2183
    %v2185 = vmax.f32 %v2184, 1e-24
    %v2186 = vrsqrt.pop %v2185
    %v2187 = vmul.f32 %v2175, %v2186
    %v2188 = vpack.c.bf16 %v2187, %v2187
    %v2189 = vld [vmem:[#allocation10] sm:$0xf]
    %v2190 = vld [vmem:[#allocation10 + $0x4] sm:$0xf]
    %v2191 = vld [vmem:[#allocation10 + $0x8] sm:$0xf]
    %v2192 = vld [vmem:[#allocation10 + $0xc] sm:$0xf]
    %v2193 = vld [vmem:[#allocation10 + $0x10] sm:$0xf]
    %v2194 = vld [vmem:[#allocation10 + $0x14] sm:$0xf]
    %v2195 = vld [vmem:[#allocation10 + $0x18] sm:$0xf]
    %v2196 = vld [vmem:[#allocation10 + $0x1c] sm:$0xf]
    %v2197 = vld [vmem:[#allocation10 + $0x20] sm:$0xf]
    %v2198 = vld [vmem:[#allocation10 + $0x24] sm:$0xf]
    %v2199 = vld [vmem:[#allocation10 + $0x28] sm:$0xf]
    %v2200 = vld [vmem:[#allocation10 + $0x2c] sm:$0xf]
    %v2201 = vld [vmem:[#allocation10 + $0x30] sm:$0xf]
    %v2202 = vld [vmem:[#allocation10 + $0x34] sm:$0xf]
    %v2203 = vld [vmem:[#allocation10 + $0x38] sm:$0xf]
    %v2204 = vld [vmem:[#allocation10 + $0x3c] sm:$0xf]
    %v2205 = vld [vmem:[%s6] sm:$0x1]
    %v2207 = vlaneseq
    %v2208 = vshrl.u32 %v2207, 7
    %v2209 = vsub.s32 0, %v2208
    %v2210 = vrot.slane %v2205, %v2209
    %v2228 = vunpack.c.l.b16 %v2189
    %v2229 = vunpack.c.l.b16 %v2190
    %v2230 = vunpack.c.l.b16 %v2191
    %v2231 = vunpack.c.l.b16 %v2192
    %v2232 = vunpack.c.l.b16 %v2193
    %v2233 = vunpack.c.l.b16 %v2194
    %v2234 = vunpack.c.l.b16 %v2195
    %v2235 = vunpack.c.l.b16 %v2196
    %v2236 = vunpack.c.l.b16 %v2197
    %v2237 = vunpack.c.l.b16 %v2198
    %v2238 = vunpack.c.l.b16 %v2199
    %v2239 = vunpack.c.l.b16 %v2200
    %v2240 = vunpack.c.l.b16 %v2201
    %v2241 = vunpack.c.l.b16 %v2202
    %v2242 = vunpack.c.l.b16 %v2203
    %v2243 = vunpack.c.l.b16 %v2204
    %v2244 = vpack.c.b16 %v2229, %v2228
    %v2245 = vpack.c.b16 %v2231, %v2230
    %v2246 = vpack.c.b16 %v2233, %v2232
    %v2247 = vpack.c.b16 %v2235, %v2234
    %v2248 = vpack.c.b16 %v2237, %v2236
    %v2249 = vpack.c.b16 %v2239, %v2238
    %v2250 = vpack.c.b16 %v2241, %v2240
    %v2251 = vpack.c.b16 %v2243, %v2242
    %2260 = vmatprep.subr.bf16.mxu0 0
    %2261 = vmatpush1.bf16.msra.mxu0 %v2251
    %2262 = vmatprep.subr.bf16.mxu0 0
    %2263 = vmatpush1.bf16.msra.mxu0 %v2250
    %2264 = vmatprep.subr.bf16.mxu0 0
    %2265 = vmatpush1.bf16.msra.mxu0 %v2249
    %2266 = vmatprep.subr.bf16.mxu0 0
    %2267 = vmatpush1.bf16.msra.mxu0 %v2248
    %2268 = vmatprep.subr.bf16.mxu0 0
    %2269 = vmatpush1.bf16.msra.mxu0 %v2247
    %2270 = vmatprep.subr.bf16.mxu0 0
    %2271 = vmatpush1.bf16.msra.mxu0 %v2246
    %2272 = vmatprep.subr.bf16.mxu0 0
    %2273 = vmatpush1.bf16.msra.mxu0 %v2245
    %2274 = vmatprep.subr.bf16.mxu0 0
    %2275 = vmatpush1.bf16.msra.mxu0 %v2244
    %2276 = vmatprep.subr.bf16.mxu0 0
    %2277 = vmatpush2.bf16.msra.mxu0 0
    %2278 = vmatprep.subr.bf16.mxu0 0
    %2279 = vmatpush2.bf16.msra.mxu0 0
    %2280 = vmatprep.subr.bf16.mxu0 0
    %2281 = vmatpush2.bf16.msra.mxu0 0
    %2282 = vmatprep.subr.bf16.mxu0 0
    %2283 = vmatpush2.bf16.msra.mxu0 0
    %2284 = vmatprep.subr.bf16.mxu0 0
    %2285 = vmatpush2.bf16.msra.mxu0 0
    %2286 = vmatprep.subr.bf16.mxu0 0
    %2287 = vmatpush2.bf16.msra.mxu0 0
    %2288 = vmatprep.subr.bf16.mxu0 0
    %2289 = vmatpush2.bf16.msra.mxu0 0
    %2290 = vmatprep.subr.bf16.mxu0 0
    %2291 = vmatpush2.bf16.msra.mxu0 0
    %2292 = vmatprep.mubr.bf16.mxu0 0
    %2293 = vmatmul.mubr.bf16.gmra.mxu0 %v2188
    %v2294 = vpop.f32.mrf.mxu0
    %v2295 = vadd.f32 %v2210, %v2294
    %v2296 = vpop.f32.mrf.mxu0
    %v2297 = vpop.f32.mrf.mxu0
    %v2298 = vpop.f32.mrf.mxu0
    %2299 = vdwg.mxu0
    %2300 = vst [vmem:[#allocation11] sm:$0x3] %v2295
    // Predicated region
    $region50: #{tpu_custom_call.1} parent=1 // pred_check
      _
    $region51: #{tpu_custom_call.1} parent=1 // pred_check_branch
      %2302 = sbr.rel (0) target = $region53
    $region52: #{tpu_custom_call.1} parent=1 // pred_region
      %s2304 = ssub.s32 32, 32
      %2305 = vsyncadd [#allocation4], %s2304
      %s2307 = sshll.u32 [#allocation11], 4
      %s2308 = int_to_ptr.vmem [resolvable:$true] %s2307
      %2310 = dma.vmem_to_hbm [thread:$0]  %s2308, 32, %s7, [#allocation4]
    $region53: #{tpu_custom_call.1} parent=1 // pred_fallthru
      _
    // Predicated region
    $region54: #{tpu_custom_call.1} parent=1 // pred_check
      _
    $region55: #{tpu_custom_call.1} parent=1 // pred_check_branch
      %2312 = sbr.rel (0) target = $region57
    $region56: #{tpu_custom_call.1} parent=1 // pred_region
      %2313 = dma.done [#allocation4], 32
    $region57: #{tpu_custom_call.1} parent=1 // pred_fallthru
      _
    %2314 = vsyncpa [#allocation3], 1
    %2315 = vsyncpa [#allocation6], 1
    %2316 = vsyncpa [#allocation9], 1
    %2317 = vsyncpa [#allocation4], 1

</llo_original>
